<compile_context>
chip_gen: v7x
topology: tpu7x:2x2x1
jax: 0.10.0
libtpu: 0.0.40
codegen_flags: <defaults>
</compile_context>

<pallas_src>
import functools
import math

import numpy as np
import jax
import jax.numpy as jnp
from jax.experimental import pallas as pl
from jax.experimental.pallas import tpu as pltpu

# ----------------------- synthetic Qwen2 config -----------------------
HIDDEN = 64
N_HEADS = 4
N_KV_HEADS = 2
HEAD_DIM = HIDDEN // N_HEADS          # 16
GROUP = N_HEADS // N_KV_HEADS
Q_DIM = N_HEADS * HEAD_DIM            # 64
KV_DIM = N_KV_HEADS * HEAD_DIM        # 32
QKV_DIM = Q_DIM + 2 * KV_DIM          # 128  (lane-dense fused QKV output)
INTERMEDIATE = 128
EPS = 1e-6
ROPE_THETA = 10000.0

VMEM_SPEC = pl.BlockSpec(memory_space=pltpu.MemorySpace.VMEM)


# ------------------------------ kernel --------------------------------
def _decoder_layer_kernel(x_ref, ln1_ref, wqkv_ref, bqkv_ref, cos_ref, sin_ref,
                          rot_ref, eye_s_ref, past_ref, mask_ref, ow_ref,
                          ln2_ref, guw_ref, dw_ref, eye_c_ref,
                          out_ref, kv_ref, *,
                          eps, inter, n_heads, n_kv_heads, head_dim, past_len):
    """Entire decoder layer: norm+QKV+RoPE, KV cache, GQA attention, o_proj, norm+MLP, residuals."""
    b_sz, _, seq = x_ref.shape
    group = n_heads // n_kv_heads
    q_dim = n_heads * head_dim
    kv_dim = n_kv_heads * head_dim

    # ---- NCHW -> token-major; per-batch transpose folded into identity matmuls (MXU) ----
    xt = jnp.concatenate(
        [jax.lax.dot_general(eye_s_ref[...], x_ref[b], (((1,), (1,)), ((), ())),
                             preferred_element_type=jnp.float32)
         for b in range(b_sz)], axis=0)                                 # (B*S, C)

    # ---- RMSNorm 1 + fused QKV projection + bias + RoPE (single lane-dense matmul) ----
    var = jnp.mean(xt * xt, axis=-1, keepdims=True)
    xn = (xt * jax.lax.rsqrt(var + eps)) * ln1_ref[...]
    qkv = jnp.dot(xn.astype(jnp.bfloat16), wqkv_ref[...],
                  preferred_element_type=jnp.float32) + bqkv_ref[...]   # (B*S, 128)
    # rotate_half per 16-wide q/k head block expressed as a constant matmul (MXU, not VALU)
    rot = jnp.dot(qkv, rot_ref[...], preferred_element_type=jnp.float32)
    qkv = qkv * cos_ref[...] + rot * sin_ref[...]                       # q/k roped, v untouched

    # ---- KV-cache assembly + GQA attention over all B x nH heads ----
    ctx_rows = []
    for b in range(b_sz):
        qkv_b = qkv[b * seq:(b + 1) * seq]                              # (S, q+k+v)
        mask_b = mask_ref[b]                                            # (S, T) additive mask
        ctx_heads = []
        for h in range(n_kv_heads):
            ks = q_dim + h * head_dim
            vs = q_dim + kv_dim + h * head_dim
            k_new = qkv_b[:, ks:ks + head_dim]                          # (S, D) already roped
            v_new = qkv_b[:, vs:vs + head_dim]                          # (S, D)
            if past_len > 0:
                k_full = jnp.concatenate([past_ref[0, b, h], k_new], axis=0)   # (T, D)
                v_full = jnp.concatenate([past_ref[1, b, h], v_new], axis=0)
            else:
                k_full, v_full = k_new, v_new
            kv_ref[0, b, h] = k_full                                    # present_kv written in-kernel
            kv_ref[1, b, h] = v_full
            k_bf = k_full.astype(jnp.bfloat16)
            v_bf = v_full.astype(jnp.bfloat16)
            for g in range(group):                                      # GQA: q heads sharing this KV
                head = h * group + g
                q_h = qkv_b[:, head * head_dim:(head + 1) * head_dim]   # 1/sqrt(D) pre-folded
                s = jax.lax.dot_general(q_h.astype(jnp.bfloat16), k_bf,
                                        (((1,), (1,)), ((), ())),
                                        preferred_element_type=jnp.float32) + mask_b   # (S, T)
                s = s - jnp.max(s, axis=-1, keepdims=True)
                p = jnp.exp(s)
                p = p * pl.reciprocal(jnp.sum(p, axis=-1, keepdims=True), approx=True)
                ctx_heads.append(jnp.dot(p.astype(jnp.bfloat16), v_bf,
                                         preferred_element_type=jnp.float32))          # (S, D)
        ctx_rows.append(jnp.concatenate(ctx_heads, axis=-1))            # (S, nH*D)
    ctx = jnp.concatenate(ctx_rows, axis=0)                             # (B*S, nH*D)

    # ---- o_proj + residual ----
    attn = jnp.dot(ctx.astype(jnp.bfloat16), ow_ref[...],
                   preferred_element_type=jnp.float32)                  # (B*S, C)
    h1 = xt + attn

    # ---- post-attention RMSNorm + fused gate/up SwiGLU + down proj + residual ----
    var2 = jnp.mean(h1 * h1, axis=-1, keepdims=True)
    hn = (h1 * jax.lax.rsqrt(var2 + eps)) * ln2_ref[...]
    gu = jnp.dot(hn.astype(jnp.bfloat16), guw_ref[...],
                 preferred_element_type=jnp.float32)                    # (B*S, 2I), 256 lanes dense
    gate = gu[:, :inter]
    up = gu[:, inter:]
    act = (gate * jax.lax.logistic(gate)) * up                          # SiLU(gate) * up
    mlp = jnp.dot(act.astype(jnp.bfloat16), dw_ref[...],
                  preferred_element_type=jnp.float32)                   # (B*S, C)
    out2d = h1 + mlp                                                    # residual

    # ---- back to channels-first NCHW via identity matmuls ----
    for b in range(b_sz):
        out_ref[b] = jax.lax.dot_general(eye_c_ref[...], out2d[b * seq:(b + 1) * seq],
                                         (((1,), (1,)), ((), ())),
                                         preferred_element_type=jnp.float32)


# --------------------------- weight prep ------------------------------
def _build_rope_rotation():
    """(QKV_DIM, QKV_DIM) block-diag matrix implementing rotate_half per 16-wide q/k head."""
    half = HEAD_DIM // 2
    blk = np.zeros((HEAD_DIM, HEAD_DIM), np.float32)
    blk[half:, :half] = -np.eye(half, dtype=np.float32)   # out[:8]  = -x[8:]
    blk[:half, half:] = np.eye(half, dtype=np.float32)    # out[8:]  =  x[:8]
    rot = np.zeros((QKV_DIM, QKV_DIM), np.float32)
    for hb in range(N_HEADS + N_KV_HEADS):                 # q and k heads only; v columns stay 0
        s = hb * HEAD_DIM
        rot[s:s + HEAD_DIM, s:s + HEAD_DIM] = blk
    return jnp.asarray(rot)


def prepare_params(params):
    bf = jnp.bfloat16
    wqkv = jnp.concatenate([params["q_w"], params["k_w"], params["v_w"]], axis=1)   # (C, 128)
    bqkv = jnp.concatenate([params["q_b"], params["k_b"], params["v_b"]], axis=0)   # (128,)
    gate_up = jnp.concatenate([params["gate_w"], params["up_w"]], axis=1)           # (C, 2I)
    return {
        "ln1": params["input_layernorm"].reshape(1, HIDDEN).astype(jnp.float32),
        "ln2": params["post_attention_layernorm"].reshape(1, HIDDEN).astype(jnp.float32),
        "wqkv": wqkv.astype(bf),
        "bqkv": bqkv.reshape(1, QKV_DIM).astype(jnp.float32),
        "o_w": params["o_w"].astype(bf),
        "gate_up_w": gate_up.astype(bf),
        "down_w": params["down_w"].astype(bf),
        "rot": _build_rope_rotation(),                       # f32, exact +/-1 entries
        "eye_c": jnp.eye(HIDDEN, dtype=jnp.float32),
    }


def _rope_tables(position_ids, B, S):
    """cos/sin tables laid out over the fused 128-lane QKV output; q lanes pre-scaled by 1/sqrt(D)."""
    inv_freq = 1.0 / (ROPE_THETA ** (jnp.arange(0, HEAD_DIM, 2, dtype=jnp.float32) / HEAD_DIM))
    freqs = position_ids.astype(jnp.float32)[..., None] * inv_freq[None, None, :]   # (B, S, 8)
    emb = jnp.concatenate([freqs, freqs], axis=-1)                                  # (B, S, 16)
    cos, sin = jnp.cos(emb), jnp.sin(emb)
    scale = 1.0 / math.sqrt(HEAD_DIM)
    cos_q = jnp.tile(cos, (1, 1, N_HEADS)) * scale
    sin_q = jnp.tile(sin, (1, 1, N_HEADS)) * scale
    cos_k = jnp.tile(cos, (1, 1, N_KV_HEADS))
    sin_k = jnp.tile(sin, (1, 1, N_KV_HEADS))
    cos_v = jnp.ones((B, S, KV_DIM), jnp.float32)            # v passes through untouched
    sin_v = jnp.zeros((B, S, KV_DIM), jnp.float32)
    cos_full = jnp.concatenate([cos_q, cos_k, cos_v], axis=-1)                      # (B, S, 128)
    sin_full = jnp.concatenate([sin_q, sin_k, sin_v], axis=-1)
    return cos_full, sin_full


# ------------------------------ forward -------------------------------
def qwen2_decoder_layer(prep, hidden_states, attention_mask, position_ids, past_kv_values):
    B, C, _, S = hidden_states.shape
    P = past_kv_values.shape[3]
    T = P + S

    x = hidden_states.reshape(B, C, S)                 # drop the singleton spatial dim (free)
    mask = attention_mask.reshape(B, S, T)
    cos_full, sin_full = _rope_tables(position_ids, B, S)
    cos_flat = cos_full.reshape(B * S, QKV_DIM)        # free reshapes: batch folded into tokens
    sin_flat = sin_full.reshape(B * S, QKV_DIM)
    eye_s = jnp.eye(S, dtype=jnp.float32)

    out, present_kv = pl.pallas_call(
        functools.partial(_decoder_layer_kernel, eps=EPS, inter=INTERMEDIATE,
                          n_heads=N_HEADS, n_kv_heads=N_KV_HEADS,
                          head_dim=HEAD_DIM, past_len=P),
        out_shape=(jax.ShapeDtypeStruct((B, C, S), jnp.float32),
                   jax.ShapeDtypeStruct((2, B, N_KV_HEADS, T, HEAD_DIM), jnp.float32)),
        in_specs=[VMEM_SPEC] * 15,
        out_specs=(VMEM_SPEC, VMEM_SPEC),
    )(x, prep["ln1"], prep["wqkv"], prep["bqkv"], cos_flat, sin_flat,
      prep["rot"], eye_s, past_kv_values, mask, prep["o_w"],
      prep["ln2"], prep["gate_up_w"], prep["down_w"], prep["eye_c"])

    return out.reshape(B, C, 1, S), present_kv


# ------------------------------- main ---------------------------------
if __name__ == "__main__":
    B, S, P = 2, 8, 4                     # batch, new tokens, past (cached) tokens
    T = P + S

    key = jax.random.PRNGKey(0)
    keys = jax.random.split(key, 16)

    def w(k, shape, scale=0.02):
        return (scale * jax.random.normal(k, shape)).astype(jnp.float32)

    params = {
        "input_layernorm": jnp.ones((HIDDEN,), jnp.float32),
        "post_attention_layernorm": jnp.ones((HIDDEN,), jnp.float32),
        "q_w": w(keys[0], (HIDDEN, N_HEADS * HEAD_DIM)),
        "q_b": w(keys[1], (N_HEADS * HEAD_DIM,)),
        "k_w": w(keys[2], (HIDDEN, N_KV_HEADS * HEAD_DIM)),
        "k_b": w(keys[3], (N_KV_HEADS * HEAD_DIM,)),
        "v_w": w(keys[4], (HIDDEN, N_KV_HEADS * HEAD_DIM)),
        "v_b": w(keys[5], (N_KV_HEADS * HEAD_DIM,)),
        "o_w": w(keys[6], (N_HEADS * HEAD_DIM, HIDDEN)),
        "gate_w": w(keys[7], (HIDDEN, INTERMEDIATE)),
        "up_w": w(keys[8], (HIDDEN, INTERMEDIATE)),
        "down_w": w(keys[9], (INTERMEDIATE, HIDDEN)),
    }
    prep = prepare_params(params)

    hidden_states = jax.random.normal(keys[10], (B, HIDDEN, 1, S), dtype=jnp.float32)
    past_kv_values = 0.1 * jax.random.normal(
        keys[11], (2, B, N_KV_HEADS, P, HEAD_DIM), dtype=jnp.float32)

    # causal additive mask over [past + new] keys
    qi = jnp.arange(S)[:, None] + P
    kj = jnp.arange(T)[None, :]
    causal = jnp.where(kj <= qi, 0.0, -1e9).astype(jnp.float32)
    attention_mask = jnp.broadcast_to(causal, (B, 1, S, T))
    position_ids = jnp.broadcast_to(jnp.arange(P, P + S, dtype=jnp.int32)[None], (B, S))

    fwd = jax.jit(qwen2_decoder_layer)
    out, present_kv = fwd(prep, hidden_states, attention_mask, position_ids, past_kv_values)
    out = jax.block_until_ready(out)
    present_kv = jax.block_until_ready(present_kv)

    assert out.shape == (B, HIDDEN, 1, S), out.shape
    assert present_kv.shape == (2, B, N_KV_HEADS, T, HEAD_DIM), present_kv.shape
    assert bool(jnp.all(jnp.isfinite(out)))
    assert bool(jnp.all(jnp.isfinite(present_kv)))
    print("KERNEL_OK")
</pallas_src>

<mosaic_0001>
module attributes {stable_mosaic.version = 11 : i64} {
  func.func @_decoder_layer_kernel(%arg0: memref<2x64x8xf32, #tpu.memory_space<vmem>>, %arg1: memref<1x64xf32, #tpu.memory_space<vmem>>, %arg2: memref<64x128xbf16, #tpu.memory_space<vmem>>, %arg3: memref<1x128xf32, #tpu.memory_space<vmem>>, %arg4: memref<16x128xf32, #tpu.memory_space<vmem>>, %arg5: memref<16x128xf32, #tpu.memory_space<vmem>>, %arg6: memref<128x128xf32, #tpu.memory_space<vmem>>, %arg7: memref<8x8xf32, #tpu.memory_space<vmem>>, %arg8: memref<2x2x2x4x16xf32, #tpu.memory_space<vmem>>, %arg9: memref<2x8x12xf32, #tpu.memory_space<vmem>>, %arg10: memref<64x64xbf16, #tpu.memory_space<vmem>>, %arg11: memref<1x64xf32, #tpu.memory_space<vmem>>, %arg12: memref<64x256xbf16, #tpu.memory_space<vmem>>, %arg13: memref<128x64xbf16, #tpu.memory_space<vmem>>, %arg14: memref<64x64xf32, #tpu.memory_space<vmem>>, %arg15: memref<2x64x8xf32, #tpu.memory_space<vmem>>, %arg16: memref<2x2x2x12x16xf32, #tpu.memory_space<vmem>>) attributes {dimension_semantics = [], scalar_prefetch = 0 : i64, scratch_operands = 0 : i64, tpu.core_type = #tpu.core_type<tc>} {
    %c0 = arith.constant 0 : index
    %c0_0 = arith.constant 0 : index
    %0 = vector.load %arg7[%c0, %c0_0] : memref<8x8xf32, #tpu.memory_space<vmem>>, vector<8x8xf32>
    %c0_1 = arith.constant 0 : index
    %c0_2 = arith.constant 0 : index
    %c0_3 = arith.constant 0 : index
    %1 = vector.load %arg0[%c0_1, %c0_2, %c0_3] : memref<2x64x8xf32, #tpu.memory_space<vmem>>, vector<1x64x8xf32>
    %2 = vector.shape_cast %1 : vector<1x64x8xf32> to vector<64x8xf32>
    %cst = arith.constant dense<0.000000e+00> : vector<8x64xf32>
    %3 = tpu.matmul %0, %2, %cst {dimension_numbers = #tpu.dot_dimension_numbers<[1], [1], [0], [0], [0, 0, 1, 0], [], []>} : vector<8x8xf32>, vector<64x8xf32>, vector<8x64xf32> -> vector<8x64xf32>
    %c0_4 = arith.constant 0 : index
    %c0_5 = arith.constant 0 : index
    %4 = vector.load %arg7[%c0_4, %c0_5] : memref<8x8xf32, #tpu.memory_space<vmem>>, vector<8x8xf32>
    %c1 = arith.constant 1 : index
    %c0_6 = arith.constant 0 : index
    %c0_7 = arith.constant 0 : index
    %5 = vector.load %arg0[%c1, %c0_6, %c0_7] : memref<2x64x8xf32, #tpu.memory_space<vmem>>, vector<1x64x8xf32>
    %6 = vector.shape_cast %5 : vector<1x64x8xf32> to vector<64x8xf32>
    %cst_8 = arith.constant dense<0.000000e+00> : vector<8x64xf32>
    %7 = tpu.matmul %4, %6, %cst_8 {dimension_numbers = #tpu.dot_dimension_numbers<[1], [1], [0], [0], [0, 0, 1, 0], [], []>} : vector<8x8xf32>, vector<64x8xf32>, vector<8x64xf32> -> vector<8x64xf32>
    %8 = tpu.concatenate %3, %7 in 0 : vector<8x64xf32>, vector<8x64xf32> -> vector<16x64xf32>
    %9 = arith.mulf %8, %8 : vector<16x64xf32>
    %cst_9 = arith.constant dense<0.000000e+00> : vector<16xf32>
    %10 = vector.multi_reduction <add>, %9, %cst_9 [1] : vector<16x64xf32> to vector<16xf32>
    %11 = vector.shape_cast %10 : vector<16xf32> to vector<16x1xf32>
    %cst_10 = arith.constant 6.400000e+01 : f32
    %12 = vector.broadcast %cst_10 : f32 to vector<16x1xf32>
    %13 = arith.divf %11, %12 : vector<16x1xf32>
    %cst_11 = arith.constant 9.99999997E-7 : f32
    %14 = vector.broadcast %cst_11 : f32 to vector<16x1xf32>
    %15 = arith.addf %13, %14 : vector<16x1xf32>
    %16 = math.rsqrt %15 : vector<16x1xf32>
    %17 = vector.broadcast %16 : vector<16x1xf32> to vector<16x64xf32>
    %18 = arith.mulf %8, %17 : vector<16x64xf32>
    %c0_12 = arith.constant 0 : index
    %c0_13 = arith.constant 0 : index
    %19 = vector.load %arg1[%c0_12, %c0_13] : memref<1x64xf32, #tpu.memory_space<vmem>>, vector<1x64xf32>
    %20 = vector.broadcast %19 : vector<1x64xf32> to vector<16x64xf32>
    %21 = arith.mulf %18, %20 : vector<16x64xf32>
    %22 = arith.truncf %21 : vector<16x64xf32> to vector<16x64xbf16>
    %c0_14 = arith.constant 0 : index
    %c0_15 = arith.constant 0 : index
    %23 = vector.load %arg2[%c0_14, %c0_15] : memref<64x128xbf16, #tpu.memory_space<vmem>>, vector<64x128xbf16>
    %cst_16 = arith.constant dense<0.000000e+00> : vector<16x128xf32>
    %24 = tpu.matmul %22, %23, %cst_16 {dimension_numbers = #tpu.dot_dimension_numbers<[1], [0], [0], [1], [0, 0, 1, 1], [], []>} : vector<16x64xbf16>, vector<64x128xbf16>, vector<16x128xf32> -> vector<16x128xf32>
    %c0_17 = arith.constant 0 : index
    %c0_18 = arith.constant 0 : index
    %25 = vector.load %arg3[%c0_17, %c0_18] : memref<1x128xf32, #tpu.memory_space<vmem>>, vector<1x128xf32>
    %26 = vector.broadcast %25 : vector<1x128xf32> to vector<16x128xf32>
    %27 = arith.addf %24, %26 : vector<16x128xf32>
    %c0_19 = arith.constant 0 : index
    %c0_20 = arith.constant 0 : index
    %28 = vector.load %arg6[%c0_19, %c0_20] : memref<128x128xf32, #tpu.memory_space<vmem>>, vector<128x128xf32>
    %cst_21 = arith.constant dense<0.000000e+00> : vector<16x128xf32>
    %29 = tpu.matmul %27, %28, %cst_21 {dimension_numbers = #tpu.dot_dimension_numbers<[1], [0], [0], [1], [0, 0, 1, 1], [], []>} : vector<16x128xf32>, vector<128x128xf32>, vector<16x128xf32> -> vector<16x128xf32>
    %c0_22 = arith.constant 0 : index
    %c0_23 = arith.constant 0 : index
    %30 = vector.load %arg4[%c0_22, %c0_23] : memref<16x128xf32, #tpu.memory_space<vmem>>, vector<16x128xf32>
    %31 = arith.mulf %27, %30 : vector<16x128xf32>
    %c0_24 = arith.constant 0 : index
    %c0_25 = arith.constant 0 : index
    %32 = vector.load %arg5[%c0_24, %c0_25] : memref<16x128xf32, #tpu.memory_space<vmem>>, vector<16x128xf32>
    %33 = arith.mulf %29, %32 : vector<16x128xf32>
    %34 = arith.addf %31, %33 : vector<16x128xf32>
    %35 = vector.extract_strided_slice %34 {offsets = [0, 0], sizes = [8, 128], strides = [1, 1]} : vector<16x128xf32> to vector<8x128xf32>
    %c0_26 = arith.constant 0 : index
    %c0_27 = arith.constant 0 : index
    %c0_28 = arith.constant 0 : index
    %36 = vector.load %arg9[%c0_26, %c0_27, %c0_28] : memref<2x8x12xf32, #tpu.memory_space<vmem>>, vector<1x8x12xf32>
    %37 = vector.shape_cast %36 : vector<1x8x12xf32> to vector<8x12xf32>
    %38 = vector.extract_strided_slice %35 {offsets = [0, 64], sizes = [8, 16], strides = [1, 1]} : vector<8x128xf32> to vector<8x16xf32>
    %39 = vector.extract_strided_slice %35 {offsets = [0, 96], sizes = [8, 16], strides = [1, 1]} : vector<8x128xf32> to vector<8x16xf32>
    %c0_29 = arith.constant 0 : index
    %c0_30 = arith.constant 0 : index
    %c0_31 = arith.constant 0 : index
    %c0_32 = arith.constant 0 : index
    %c0_33 = arith.constant 0 : index
    %40 = vector.load %arg8[%c0_29, %c0_30, %c0_31, %c0_32, %c0_33] : memref<2x2x2x4x16xf32, #tpu.memory_space<vmem>>, vector<1x1x1x4x16xf32>
    %41 = vector.shape_cast %40 : vector<1x1x1x4x16xf32> to vector<4x16xf32>
    %42 = tpu.concatenate %41, %38 in 0 : vector<4x16xf32>, vector<8x16xf32> -> vector<12x16xf32>
    %c1_34 = arith.constant 1 : index
    %c0_35 = arith.constant 0 : index
    %c0_36 = arith.constant 0 : index
    %c0_37 = arith.constant 0 : index
    %c0_38 = arith.constant 0 : index
    %43 = vector.load %arg8[%c1_34, %c0_35, %c0_36, %c0_37, %c0_38] : memref<2x2x2x4x16xf32, #tpu.memory_space<vmem>>, vector<1x1x1x4x16xf32>
    %44 = vector.shape_cast %43 : vector<1x1x1x4x16xf32> to vector<4x16xf32>
    %45 = tpu.concatenate %44, %39 in 0 : vector<4x16xf32>, vector<8x16xf32> -> vector<12x16xf32>
    %c0_39 = arith.constant 0 : index
    %c0_40 = arith.constant 0 : index
    %c0_41 = arith.constant 0 : index
    %c0_42 = arith.constant 0 : index
    %c0_43 = arith.constant 0 : index
    %46 = vector.load %arg16[%c0_39, %c0_40, %c0_41, %c0_42, %c0_43] : memref<2x2x2x12x16xf32, #tpu.memory_space<vmem>>, vector<1x1x1x12x16xf32>
    %47 = vector.shape_cast %46 : vector<1x1x1x12x16xf32> to vector<12x16xf32>
    %48 = vector.shape_cast %42 : vector<12x16xf32> to vector<1x1x1x12x16xf32>
    tpu.vector_store %arg16[%c0_39, %c0_40, %c0_41, %c0_42, %c0_43], %48 {strides = array<i32>} : memref<2x2x2x12x16xf32, #tpu.memory_space<vmem>>, vector<1x1x1x12x16xf32>,
    %c1_44 = arith.constant 1 : index
    %c0_45 = arith.constant 0 : index
    %c0_46 = arith.constant 0 : index
    %c0_47 = arith.constant 0 : index
    %c0_48 = arith.constant 0 : index
    %49 = vector.load %arg16[%c1_44, %c0_45, %c0_46, %c0_47, %c0_48] : memref<2x2x2x12x16xf32, #tpu.memory_space<vmem>>, vector<1x1x1x12x16xf32>
    %50 = vector.shape_cast %49 : vector<1x1x1x12x16xf32> to vector<12x16xf32>
    %51 = vector.shape_cast %45 : vector<12x16xf32> to vector<1x1x1x12x16xf32>
    tpu.vector_store %arg16[%c1_44, %c0_45, %c0_46, %c0_47, %c0_48], %51 {strides = array<i32>} : memref<2x2x2x12x16xf32, #tpu.memory_space<vmem>>, vector<1x1x1x12x16xf32>,
    %52 = arith.truncf %42 : vector<12x16xf32> to vector<12x16xbf16>
    %53 = arith.truncf %45 : vector<12x16xf32> to vector<12x16xbf16>
    %54 = vector.extract_strided_slice %35 {offsets = [0, 0], sizes = [8, 16], strides = [1, 1]} : vector<8x128xf32> to vector<8x16xf32>
    %55 = arith.truncf %54 : vector<8x16xf32> to vector<8x16xbf16>
    %cst_49 = arith.constant dense<0.000000e+00> : vector<8x12xf32>
    %56 = tpu.matmul %55, %52, %cst_49 {dimension_numbers = #tpu.dot_dimension_numbers<[1], [1], [0], [0], [0, 0, 1, 0], [], []>} : vector<8x16xbf16>, vector<12x16xbf16>, vector<8x12xf32> -> vector<8x12xf32>
    %57 = arith.addf %56, %37 : vector<8x12xf32>
    %cst_50 = arith.constant dense<0xFF800000> : vector<8xf32>
    %58 = vector.multi_reduction <maximumf>, %57, %cst_50 [1] : vector<8x12xf32> to vector<8xf32>
    %59 = vector.shape_cast %58 : vector<8xf32> to vector<8x1xf32>
    %60 = vector.broadcast %59 : vector<8x1xf32> to vector<8x12xf32>
    %61 = arith.subf %57, %60 : vector<8x12xf32>
    %62 = math.exp %61 : vector<8x12xf32>
    %cst_51 = arith.constant dense<0.000000e+00> : vector<8xf32>
    %63 = vector.multi_reduction <add>, %62, %cst_51 [1] : vector<8x12xf32> to vector<8xf32>
    %64 = vector.shape_cast %63 : vector<8xf32> to vector<8x1xf32>
    %65 = tpu.reciprocal %64 {approx = true} : vector<8x1xf32> -> vector<8x1xf32>
    %66 = vector.broadcast %65 : vector<8x1xf32> to vector<8x12xf32>
    %67 = arith.mulf %62, %66 : vector<8x12xf32>
    %68 = arith.truncf %67 : vector<8x12xf32> to vector<8x12xbf16>
    %cst_52 = arith.constant dense<0.000000e+00> : vector<8x16xf32>
    %69 = tpu.matmul %68, %53, %cst_52 {dimension_numbers = #tpu.dot_dimension_numbers<[1], [0], [0], [1], [0, 0, 1, 1], [], []>} : vector<8x12xbf16>, vector<12x16xbf16>, vector<8x16xf32> -> vector<8x16xf32>
    %70 = vector.extract_strided_slice %35 {offsets = [0, 16], sizes = [8, 16], strides = [1, 1]} : vector<8x128xf32> to vector<8x16xf32>
    %71 = arith.truncf %70 : vector<8x16xf32> to vector<8x16xbf16>
    %cst_53 = arith.constant dense<0.000000e+00> : vector<8x12xf32>
    %72 = tpu.matmul %71, %52, %cst_53 {dimension_numbers = #tpu.dot_dimension_numbers<[1], [1], [0], [0], [0, 0, 1, 0], [], []>} : vector<8x16xbf16>, vector<12x16xbf16>, vector<8x12xf32> -> vector<8x12xf32>
    %73 = arith.addf %72, %37 : vector<8x12xf32>
    %cst_54 = arith.constant dense<0xFF800000> : vector<8xf32>
    %74 = vector.multi_reduction <maximumf>, %73, %cst_54 [1] : vector<8x12xf32> to vector<8xf32>
    %75 = vector.shape_cast %74 : vector<8xf32> to vector<8x1xf32>
    %76 = vector.broadcast %75 : vector<8x1xf32> to vector<8x12xf32>
    %77 = arith.subf %73, %76 : vector<8x12xf32>
    %78 = math.exp %77 : vector<8x12xf32>
    %cst_55 = arith.constant dense<0.000000e+00> : vector<8xf32>
    %79 = vector.multi_reduction <add>, %78, %cst_55 [1] : vector<8x12xf32> to vector<8xf32>
    %80 = vector.shape_cast %79 : vector<8xf32> to vector<8x1xf32>
    %81 = tpu.reciprocal %80 {approx = true} : vector<8x1xf32> -> vector<8x1xf32>
    %82 = vector.broadcast %81 : vector<8x1xf32> to vector<8x12xf32>
    %83 = arith.mulf %78, %82 : vector<8x12xf32>
    %84 = arith.truncf %83 : vector<8x12xf32> to vector<8x12xbf16>
    %cst_56 = arith.constant dense<0.000000e+00> : vector<8x16xf32>
    %85 = tpu.matmul %84, %53, %cst_56 {dimension_numbers = #tpu.dot_dimension_numbers<[1], [0], [0], [1], [0, 0, 1, 1], [], []>} : vector<8x12xbf16>, vector<12x16xbf16>, vector<8x16xf32> -> vector<8x16xf32>
    %86 = vector.extract_strided_slice %35 {offsets = [0, 80], sizes = [8, 16], strides = [1, 1]} : vector<8x128xf32> to vector<8x16xf32>
    %87 = vector.extract_strided_slice %35 {offsets = [0, 112], sizes = [8, 16], strides = [1, 1]} : vector<8x128xf32> to vector<8x16xf32>
    %c0_57 = arith.constant 0 : index
    %c0_58 = arith.constant 0 : index
    %c1_59 = arith.constant 1 : index
    %c0_60 = arith.constant 0 : index
    %c0_61 = arith.constant 0 : index
    %88 = vector.load %arg8[%c0_57, %c0_58, %c1_59, %c0_60, %c0_61] : memref<2x2x2x4x16xf32, #tpu.memory_space<vmem>>, vector<1x1x1x4x16xf32>
    %89 = vector.shape_cast %88 : vector<1x1x1x4x16xf32> to vector<4x16xf32>
    %90 = tpu.concatenate %89, %86 in 0 : vector<4x16xf32>, vector<8x16xf32> -> vector<12x16xf32>
    %c1_62 = arith.constant 1 : index
    %c0_63 = arith.constant 0 : index
    %c1_64 = arith.constant 1 : index
    %c0_65 = arith.constant 0 : index
    %c0_66 = arith.constant 0 : index
    %91 = vector.load %arg8[%c1_62, %c0_63, %c1_64, %c0_65, %c0_66] : memref<2x2x2x4x16xf32, #tpu.memory_space<vmem>>, vector<1x1x1x4x16xf32>
    %92 = vector.shape_cast %91 : vector<1x1x1x4x16xf32> to vector<4x16xf32>
    %93 = tpu.concatenate %92, %87 in 0 : vector<4x16xf32>, vector<8x16xf32> -> vector<12x16xf32>
    %c0_67 = arith.constant 0 : index
    %c0_68 = arith.constant 0 : index
    %c1_69 = arith.constant 1 : index
    %c0_70 = arith.constant 0 : index
    %c0_71 = arith.constant 0 : index
    %94 = vector.load %arg16[%c0_67, %c0_68, %c1_69, %c0_70, %c0_71] : memref<2x2x2x12x16xf32, #tpu.memory_space<vmem>>, vector<1x1x1x12x16xf32>
    %95 = vector.shape_cast %94 : vector<1x1x1x12x16xf32> to vector<12x16xf32>
    %96 = vector.shape_cast %90 : vector<12x16xf32> to vector<1x1x1x12x16xf32>
    tpu.vector_store %arg16[%c0_67, %c0_68, %c1_69, %c0_70, %c0_71], %96 {strides = array<i32>} : memref<2x2x2x12x16xf32, #tpu.memory_space<vmem>>, vector<1x1x1x12x16xf32>,
    %c1_72 = arith.constant 1 : index
    %c0_73 = arith.constant 0 : index
    %c1_74 = arith.constant 1 : index
    %c0_75 = arith.constant 0 : index
    %c0_76 = arith.constant 0 : index
    %97 = vector.load %arg16[%c1_72, %c0_73, %c1_74, %c0_75, %c0_76] : memref<2x2x2x12x16xf32, #tpu.memory_space<vmem>>, vector<1x1x1x12x16xf32>
    %98 = vector.shape_cast %97 : vector<1x1x1x12x16xf32> to vector<12x16xf32>
    %99 = vector.shape_cast %93 : vector<12x16xf32> to vector<1x1x1x12x16xf32>
    tpu.vector_store %arg16[%c1_72, %c0_73, %c1_74, %c0_75, %c0_76], %99 {strides = array<i32>} : memref<2x2x2x12x16xf32, #tpu.memory_space<vmem>>, vector<1x1x1x12x16xf32>,
    %100 = arith.truncf %90 : vector<12x16xf32> to vector<12x16xbf16>
    %101 = arith.truncf %93 : vector<12x16xf32> to vector<12x16xbf16>
    %102 = vector.extract_strided_slice %35 {offsets = [0, 32], sizes = [8, 16], strides = [1, 1]} : vector<8x128xf32> to vector<8x16xf32>
    %103 = arith.truncf %102 : vector<8x16xf32> to vector<8x16xbf16>
    %cst_77 = arith.constant dense<0.000000e+00> : vector<8x12xf32>
    %104 = tpu.matmul %103, %100, %cst_77 {dimension_numbers = #tpu.dot_dimension_numbers<[1], [1], [0], [0], [0, 0, 1, 0], [], []>} : vector<8x16xbf16>, vector<12x16xbf16>, vector<8x12xf32> -> vector<8x12xf32>
    %105 = arith.addf %104, %37 : vector<8x12xf32>
    %cst_78 = arith.constant dense<0xFF800000> : vector<8xf32>
    %106 = vector.multi_reduction <maximumf>, %105, %cst_78 [1] : vector<8x12xf32> to vector<8xf32>
    %107 = vector.shape_cast %106 : vector<8xf32> to vector<8x1xf32>
    %108 = vector.broadcast %107 : vector<8x1xf32> to vector<8x12xf32>
    %109 = arith.subf %105, %108 : vector<8x12xf32>
    %110 = math.exp %109 : vector<8x12xf32>
    %cst_79 = arith.constant dense<0.000000e+00> : vector<8xf32>
    %111 = vector.multi_reduction <add>, %110, %cst_79 [1] : vector<8x12xf32> to vector<8xf32>
    %112 = vector.shape_cast %111 : vector<8xf32> to vector<8x1xf32>
    %113 = tpu.reciprocal %112 {approx = true} : vector<8x1xf32> -> vector<8x1xf32>
    %114 = vector.broadcast %113 : vector<8x1xf32> to vector<8x12xf32>
    %115 = arith.mulf %110, %114 : vector<8x12xf32>
    %116 = arith.truncf %115 : vector<8x12xf32> to vector<8x12xbf16>
    %cst_80 = arith.constant dense<0.000000e+00> : vector<8x16xf32>
    %117 = tpu.matmul %116, %101, %cst_80 {dimension_numbers = #tpu.dot_dimension_numbers<[1], [0], [0], [1], [0, 0, 1, 1], [], []>} : vector<8x12xbf16>, vector<12x16xbf16>, vector<8x16xf32> -> vector<8x16xf32>
    %118 = vector.extract_strided_slice %35 {offsets = [0, 48], sizes = [8, 16], strides = [1, 1]} : vector<8x128xf32> to vector<8x16xf32>
    %119 = arith.truncf %118 : vector<8x16xf32> to vector<8x16xbf16>
    %cst_81 = arith.constant dense<0.000000e+00> : vector<8x12xf32>
    %120 = tpu.matmul %119, %100, %cst_81 {dimension_numbers = #tpu.dot_dimension_numbers<[1], [1], [0], [0], [0, 0, 1, 0], [], []>} : vector<8x16xbf16>, vector<12x16xbf16>, vector<8x12xf32> -> vector<8x12xf32>
    %121 = arith.addf %120, %37 : vector<8x12xf32>
    %cst_82 = arith.constant dense<0xFF800000> : vector<8xf32>
    %122 = vector.multi_reduction <maximumf>, %121, %cst_82 [1] : vector<8x12xf32> to vector<8xf32>
    %123 = vector.shape_cast %122 : vector<8xf32> to vector<8x1xf32>
    %124 = vector.broadcast %123 : vector<8x1xf32> to vector<8x12xf32>
    %125 = arith.subf %121, %124 : vector<8x12xf32>
    %126 = math.exp %125 : vector<8x12xf32>
    %cst_83 = arith.constant dense<0.000000e+00> : vector<8xf32>
    %127 = vector.multi_reduction <add>, %126, %cst_83 [1] : vector<8x12xf32> to vector<8xf32>
    %128 = vector.shape_cast %127 : vector<8xf32> to vector<8x1xf32>
    %129 = tpu.reciprocal %128 {approx = true} : vector<8x1xf32> -> vector<8x1xf32>
    %130 = vector.broadcast %129 : vector<8x1xf32> to vector<8x12xf32>
    %131 = arith.mulf %126, %130 : vector<8x12xf32>
    %132 = arith.truncf %131 : vector<8x12xf32> to vector<8x12xbf16>
    %cst_84 = arith.constant dense<0.000000e+00> : vector<8x16xf32>
    %133 = tpu.matmul %132, %101, %cst_84 {dimension_numbers = #tpu.dot_dimension_numbers<[1], [0], [0], [1], [0, 0, 1, 1], [], []>} : vector<8x12xbf16>, vector<12x16xbf16>, vector<8x16xf32> -> vector<8x16xf32>
    %134 = tpu.concatenate %69, %85, %117, %133 in 1 : vector<8x16xf32>, vector<8x16xf32>, vector<8x16xf32>, vector<8x16xf32> -> vector<8x64xf32>
    %135 = vector.extract_strided_slice %34 {offsets = [8, 0], sizes = [8, 128], strides = [1, 1]} : vector<16x128xf32> to vector<8x128xf32>
    %c1_85 = arith.constant 1 : index
    %c0_86 = arith.constant 0 : index
    %c0_87 = arith.constant 0 : index
    %136 = vector.load %arg9[%c1_85, %c0_86, %c0_87] : memref<2x8x12xf32, #tpu.memory_space<vmem>>, vector<1x8x12xf32>
    %137 = vector.shape_cast %136 : vector<1x8x12xf32> to vector<8x12xf32>
    %138 = vector.extract_strided_slice %135 {offsets = [0, 64], sizes = [8, 16], strides = [1, 1]} : vector<8x128xf32> to vector<8x16xf32>
    %139 = vector.extract_strided_slice %135 {offsets = [0, 96], sizes = [8, 16], strides = [1, 1]} : vector<8x128xf32> to vector<8x16xf32>
    %c0_88 = arith.constant 0 : index
    %c1_89 = arith.constant 1 : index
    %c0_90 = arith.constant 0 : index
    %c0_91 = arith.constant 0 : index
    %c0_92 = arith.constant 0 : index
    %140 = vector.load %arg8[%c0_88, %c1_89, %c0_90, %c0_91, %c0_92] : memref<2x2x2x4x16xf32, #tpu.memory_space<vmem>>, vector<1x1x1x4x16xf32>
    %141 = vector.shape_cast %140 : vector<1x1x1x4x16xf32> to vector<4x16xf32>
    %142 = tpu.concatenate %141, %138 in 0 : vector<4x16xf32>, vector<8x16xf32> -> vector<12x16xf32>
    %c1_93 = arith.constant 1 : index
    %c1_94 = arith.constant 1 : index
    %c0_95 = arith.constant 0 : index
    %c0_96 = arith.constant 0 : index
    %c0_97 = arith.constant 0 : index
    %143 = vector.load %arg8[%c1_93, %c1_94, %c0_95, %c0_96, %c0_97] : memref<2x2x2x4x16xf32, #tpu.memory_space<vmem>>, vector<1x1x1x4x16xf32>
    %144 = vector.shape_cast %143 : vector<1x1x1x4x16xf32> to vector<4x16xf32>
    %145 = tpu.concatenate %144, %139 in 0 : vector<4x16xf32>, vector<8x16xf32> -> vector<12x16xf32>
    %c0_98 = arith.constant 0 : index
    %c1_99 = arith.constant 1 : index
    %c0_100 = arith.constant 0 : index
    %c0_101 = arith.constant 0 : index
    %c0_102 = arith.constant 0 : index
    %146 = vector.load %arg16[%c0_98, %c1_99, %c0_100, %c0_101, %c0_102] : memref<2x2x2x12x16xf32, #tpu.memory_space<vmem>>, vector<1x1x1x12x16xf32>
    %147 = vector.shape_cast %146 : vector<1x1x1x12x16xf32> to vector<12x16xf32>
    %148 = vector.shape_cast %142 : vector<12x16xf32> to vector<1x1x1x12x16xf32>
    tpu.vector_store %arg16[%c0_98, %c1_99, %c0_100, %c0_101, %c0_102], %148 {strides = array<i32>} : memref<2x2x2x12x16xf32, #tpu.memory_space<vmem>>, vector<1x1x1x12x16xf32>,
    %c1_103 = arith.constant 1 : index
    %c1_104 = arith.constant 1 : index
    %c0_105 = arith.constant 0 : index
    %c0_106 = arith.constant 0 : index
    %c0_107 = arith.constant 0 : index
    %149 = vector.load %arg16[%c1_103, %c1_104, %c0_105, %c0_106, %c0_107] : memref<2x2x2x12x16xf32, #tpu.memory_space<vmem>>, vector<1x1x1x12x16xf32>
    %150 = vector.shape_cast %149 : vector<1x1x1x12x16xf32> to vector<12x16xf32>
    %151 = vector.shape_cast %145 : vector<12x16xf32> to vector<1x1x1x12x16xf32>
    tpu.vector_store %arg16[%c1_103, %c1_104, %c0_105, %c0_106, %c0_107], %151 {strides = array<i32>} : memref<2x2x2x12x16xf32, #tpu.memory_space<vmem>>, vector<1x1x1x12x16xf32>,
    %152 = arith.truncf %142 : vector<12x16xf32> to vector<12x16xbf16>
    %153 = arith.truncf %145 : vector<12x16xf32> to vector<12x16xbf16>
    %154 = vector.extract_strided_slice %135 {offsets = [0, 0], sizes = [8, 16], strides = [1, 1]} : vector<8x128xf32> to vector<8x16xf32>
    %155 = arith.truncf %154 : vector<8x16xf32> to vector<8x16xbf16>
    %cst_108 = arith.constant dense<0.000000e+00> : vector<8x12xf32>
    %156 = tpu.matmul %155, %152, %cst_108 {dimension_numbers = #tpu.dot_dimension_numbers<[1], [1], [0], [0], [0, 0, 1, 0], [], []>} : vector<8x16xbf16>, vector<12x16xbf16>, vector<8x12xf32> -> vector<8x12xf32>
    %157 = arith.addf %156, %137 : vector<8x12xf32>
    %cst_109 = arith.constant dense<0xFF800000> : vector<8xf32>
    %158 = vector.multi_reduction <maximumf>, %157, %cst_109 [1] : vector<8x12xf32> to vector<8xf32>
    %159 = vector.shape_cast %158 : vector<8xf32> to vector<8x1xf32>
    %160 = vector.broadcast %159 : vector<8x1xf32> to vector<8x12xf32>
    %161 = arith.subf %157, %160 : vector<8x12xf32>
    %162 = math.exp %161 : vector<8x12xf32>
    %cst_110 = arith.constant dense<0.000000e+00> : vector<8xf32>
    %163 = vector.multi_reduction <add>, %162, %cst_110 [1] : vector<8x12xf32> to vector<8xf32>
    %164 = vector.shape_cast %163 : vector<8xf32> to vector<8x1xf32>
    %165 = tpu.reciprocal %164 {approx = true} : vector<8x1xf32> -> vector<8x1xf32>
    %166 = vector.broadcast %165 : vector<8x1xf32> to vector<8x12xf32>
    %167 = arith.mulf %162, %166 : vector<8x12xf32>
    %168 = arith.truncf %167 : vector<8x12xf32> to vector<8x12xbf16>
    %cst_111 = arith.constant dense<0.000000e+00> : vector<8x16xf32>
    %169 = tpu.matmul %168, %153, %cst_111 {dimension_numbers = #tpu.dot_dimension_numbers<[1], [0], [0], [1], [0, 0, 1, 1], [], []>} : vector<8x12xbf16>, vector<12x16xbf16>, vector<8x16xf32> -> vector<8x16xf32>
    %170 = vector.extract_strided_slice %135 {offsets = [0, 16], sizes = [8, 16], strides = [1, 1]} : vector<8x128xf32> to vector<8x16xf32>
    %171 = arith.truncf %170 : vector<8x16xf32> to vector<8x16xbf16>
    %cst_112 = arith.constant dense<0.000000e+00> : vector<8x12xf32>
    %172 = tpu.matmul %171, %152, %cst_112 {dimension_numbers = #tpu.dot_dimension_numbers<[1], [1], [0], [0], [0, 0, 1, 0], [], []>} : vector<8x16xbf16>, vector<12x16xbf16>, vector<8x12xf32> -> vector<8x12xf32>
    %173 = arith.addf %172, %137 : vector<8x12xf32>
    %cst_113 = arith.constant dense<0xFF800000> : vector<8xf32>
    %174 = vector.multi_reduction <maximumf>, %173, %cst_113 [1] : vector<8x12xf32> to vector<8xf32>
    %175 = vector.shape_cast %174 : vector<8xf32> to vector<8x1xf32>
    %176 = vector.broadcast %175 : vector<8x1xf32> to vector<8x12xf32>
    %177 = arith.subf %173, %176 : vector<8x12xf32>
    %178 = math.exp %177 : vector<8x12xf32>
    %cst_114 = arith.constant dense<0.000000e+00> : vector<8xf32>
    %179 = vector.multi_reduction <add>, %178, %cst_114 [1] : vector<8x12xf32> to vector<8xf32>
    %180 = vector.shape_cast %179 : vector<8xf32> to vector<8x1xf32>
    %181 = tpu.reciprocal %180 {approx = true} : vector<8x1xf32> -> vector<8x1xf32>
    %182 = vector.broadcast %181 : vector<8x1xf32> to vector<8x12xf32>
    %183 = arith.mulf %178, %182 : vector<8x12xf32>
    %184 = arith.truncf %183 : vector<8x12xf32> to vector<8x12xbf16>
    %cst_115 = arith.constant dense<0.000000e+00> : vector<8x16xf32>
    %185 = tpu.matmul %184, %153, %cst_115 {dimension_numbers = #tpu.dot_dimension_numbers<[1], [0], [0], [1], [0, 0, 1, 1], [], []>} : vector<8x12xbf16>, vector<12x16xbf16>, vector<8x16xf32> -> vector<8x16xf32>
    %186 = vector.extract_strided_slice %135 {offsets = [0, 80], sizes = [8, 16], strides = [1, 1]} : vector<8x128xf32> to vector<8x16xf32>
    %187 = vector.extract_strided_slice %135 {offsets = [0, 112], sizes = [8, 16], strides = [1, 1]} : vector<8x128xf32> to vector<8x16xf32>
    %c0_116 = arith.constant 0 : index
    %c1_117 = arith.constant 1 : index
    %c1_118 = arith.constant 1 : index
    %c0_119 = arith.constant 0 : index
    %c0_120 = arith.constant 0 : index
    %188 = vector.load %arg8[%c0_116, %c1_117, %c1_118, %c0_119, %c0_120] : memref<2x2x2x4x16xf32, #tpu.memory_space<vmem>>, vector<1x1x1x4x16xf32>
    %189 = vector.shape_cast %188 : vector<1x1x1x4x16xf32> to vector<4x16xf32>
    %190 = tpu.concatenate %189, %186 in 0 : vector<4x16xf32>, vector<8x16xf32> -> vector<12x16xf32>
    %c1_121 = arith.constant 1 : index
    %c1_122 = arith.constant 1 : index
    %c1_123 = arith.constant 1 : index
    %c0_124 = arith.constant 0 : index
    %c0_125 = arith.constant 0 : index
    %191 = vector.load %arg8[%c1_121, %c1_122, %c1_123, %c0_124, %c0_125] : memref<2x2x2x4x16xf32, #tpu.memory_space<vmem>>, vector<1x1x1x4x16xf32>
    %192 = vector.shape_cast %191 : vector<1x1x1x4x16xf32> to vector<4x16xf32>
    %193 = tpu.concatenate %192, %187 in 0 : vector<4x16xf32>, vector<8x16xf32> -> vector<12x16xf32>
    %c0_126 = arith.constant 0 : index
    %c1_127 = arith.constant 1 : index
    %c1_128 = arith.constant 1 : index
    %c0_129 = arith.constant 0 : index
    %c0_130 = arith.constant 0 : index
    %194 = vector.load %arg16[%c0_126, %c1_127, %c1_128, %c0_129, %c0_130] : memref<2x2x2x12x16xf32, #tpu.memory_space<vmem>>, vector<1x1x1x12x16xf32>
    %195 = vector.shape_cast %194 : vector<1x1x1x12x16xf32> to vector<12x16xf32>
    %196 = vector.shape_cast %190 : vector<12x16xf32> to vector<1x1x1x12x16xf32>
    tpu.vector_store %arg16[%c0_126, %c1_127, %c1_128, %c0_129, %c0_130], %196 {strides = array<i32>} : memref<2x2x2x12x16xf32, #tpu.memory_space<vmem>>, vector<1x1x1x12x16xf32>,
    %c1_131 = arith.constant 1 : index
    %c1_132 = arith.constant 1 : index
    %c1_133 = arith.constant 1 : index
    %c0_134 = arith.constant 0 : index
    %c0_135 = arith.constant 0 : index
    %197 = vector.load %arg16[%c1_131, %c1_132, %c1_133, %c0_134, %c0_135] : memref<2x2x2x12x16xf32, #tpu.memory_space<vmem>>, vector<1x1x1x12x16xf32>
    %198 = vector.shape_cast %197 : vector<1x1x1x12x16xf32> to vector<12x16xf32>
    %199 = vector.shape_cast %193 : vector<12x16xf32> to vector<1x1x1x12x16xf32>
    tpu.vector_store %arg16[%c1_131, %c1_132, %c1_133, %c0_134, %c0_135], %199 {strides = array<i32>} : memref<2x2x2x12x16xf32, #tpu.memory_space<vmem>>, vector<1x1x1x12x16xf32>,
    %200 = arith.truncf %190 : vector<12x16xf32> to vector<12x16xbf16>
    %201 = arith.truncf %193 : vector<12x16xf32> to vector<12x16xbf16>
    %202 = vector.extract_strided_slice %135 {offsets = [0, 32], sizes = [8, 16], strides = [1, 1]} : vector<8x128xf32> to vector<8x16xf32>
    %203 = arith.truncf %202 : vector<8x16xf32> to vector<8x16xbf16>
    %cst_136 = arith.constant dense<0.000000e+00> : vector<8x12xf32>
    %204 = tpu.matmul %203, %200, %cst_136 {dimension_numbers = #tpu.dot_dimension_numbers<[1], [1], [0], [0], [0, 0, 1, 0], [], []>} : vector<8x16xbf16>, vector<12x16xbf16>, vector<8x12xf32> -> vector<8x12xf32>
    %205 = arith.addf %204, %137 : vector<8x12xf32>
    %cst_137 = arith.constant dense<0xFF800000> : vector<8xf32>
    %206 = vector.multi_reduction <maximumf>, %205, %cst_137 [1] : vector<8x12xf32> to vector<8xf32>
    %207 = vector.shape_cast %206 : vector<8xf32> to vector<8x1xf32>
    %208 = vector.broadcast %207 : vector<8x1xf32> to vector<8x12xf32>
    %209 = arith.subf %205, %208 : vector<8x12xf32>
    %210 = math.exp %209 : vector<8x12xf32>
    %cst_138 = arith.constant dense<0.000000e+00> : vector<8xf32>
    %211 = vector.multi_reduction <add>, %210, %cst_138 [1] : vector<8x12xf32> to vector<8xf32>
    %212 = vector.shape_cast %211 : vector<8xf32> to vector<8x1xf32>
    %213 = tpu.reciprocal %212 {approx = true} : vector<8x1xf32> -> vector<8x1xf32>
    %214 = vector.broadcast %213 : vector<8x1xf32> to vector<8x12xf32>
    %215 = arith.mulf %210, %214 : vector<8x12xf32>
    %216 = arith.truncf %215 : vector<8x12xf32> to vector<8x12xbf16>
    %cst_139 = arith.constant dense<0.000000e+00> : vector<8x16xf32>
    %217 = tpu.matmul %216, %201, %cst_139 {dimension_numbers = #tpu.dot_dimension_numbers<[1], [0], [0], [1], [0, 0, 1, 1], [], []>} : vector<8x12xbf16>, vector<12x16xbf16>, vector<8x16xf32> -> vector<8x16xf32>
    %218 = vector.extract_strided_slice %135 {offsets = [0, 48], sizes = [8, 16], strides = [1, 1]} : vector<8x128xf32> to vector<8x16xf32>
    %219 = arith.truncf %218 : vector<8x16xf32> to vector<8x16xbf16>
    %cst_140 = arith.constant dense<0.000000e+00> : vector<8x12xf32>
    %220 = tpu.matmul %219, %200, %cst_140 {dimension_numbers = #tpu.dot_dimension_numbers<[1], [1], [0], [0], [0, 0, 1, 0], [], []>} : vector<8x16xbf16>, vector<12x16xbf16>, vector<8x12xf32> -> vector<8x12xf32>
    %221 = arith.addf %220, %137 : vector<8x12xf32>
    %cst_141 = arith.constant dense<0xFF800000> : vector<8xf32>
    %222 = vector.multi_reduction <maximumf>, %221, %cst_141 [1] : vector<8x12xf32> to vector<8xf32>
    %223 = vector.shape_cast %222 : vector<8xf32> to vector<8x1xf32>
    %224 = vector.broadcast %223 : vector<8x1xf32> to vector<8x12xf32>
    %225 = arith.subf %221, %224 : vector<8x12xf32>
    %226 = math.exp %225 : vector<8x12xf32>
    %cst_142 = arith.constant dense<0.000000e+00> : vector<8xf32>
    %227 = vector.multi_reduction <add>, %226, %cst_142 [1] : vector<8x12xf32> to vector<8xf32>
    %228 = vector.shape_cast %227 : vector<8xf32> to vector<8x1xf32>
    %229 = tpu.reciprocal %228 {approx = true} : vector<8x1xf32> -> vector<8x1xf32>
    %230 = vector.broadcast %229 : vector<8x1xf32> to vector<8x12xf32>
    %231 = arith.mulf %226, %230 : vector<8x12xf32>
    %232 = arith.truncf %231 : vector<8x12xf32> to vector<8x12xbf16>
    %cst_143 = arith.constant dense<0.000000e+00> : vector<8x16xf32>
    %233 = tpu.matmul %232, %201, %cst_143 {dimension_numbers = #tpu.dot_dimension_numbers<[1], [0], [0], [1], [0, 0, 1, 1], [], []>} : vector<8x12xbf16>, vector<12x16xbf16>, vector<8x16xf32> -> vector<8x16xf32>
    %234 = tpu.concatenate %169, %185, %217, %233 in 1 : vector<8x16xf32>, vector<8x16xf32>, vector<8x16xf32>, vector<8x16xf32> -> vector<8x64xf32>
    %235 = tpu.concatenate %134, %234 in 0 : vector<8x64xf32>, vector<8x64xf32> -> vector<16x64xf32>
    %236 = arith.truncf %235 : vector<16x64xf32> to vector<16x64xbf16>
    %c0_144 = arith.constant 0 : index
    %c0_145 = arith.constant 0 : index
    %237 = vector.load %arg10[%c0_144, %c0_145] : memref<64x64xbf16, #tpu.memory_space<vmem>>, vector<64x64xbf16>
    %cst_146 = arith.constant dense<0.000000e+00> : vector<16x64xf32>
    %238 = tpu.matmul %236, %237, %cst_146 {dimension_numbers = #tpu.dot_dimension_numbers<[1], [0], [0], [1], [0, 0, 1, 1], [], []>} : vector<16x64xbf16>, vector<64x64xbf16>, vector<16x64xf32> -> vector<16x64xf32>
    %239 = arith.addf %8, %238 : vector<16x64xf32>
    %240 = arith.mulf %239, %239 : vector<16x64xf32>
    %cst_147 = arith.constant dense<0.000000e+00> : vector<16xf32>
    %241 = vector.multi_reduction <add>, %240, %cst_147 [1] : vector<16x64xf32> to vector<16xf32>
    %242 = vector.shape_cast %241 : vector<16xf32> to vector<16x1xf32>
    %cst_148 = arith.constant 6.400000e+01 : f32
    %243 = vector.broadcast %cst_148 : f32 to vector<16x1xf32>
    %244 = arith.divf %242, %243 : vector<16x1xf32>
    %cst_149 = arith.constant 9.99999997E-7 : f32
    %245 = vector.broadcast %cst_149 : f32 to vector<16x1xf32>
    %246 = arith.addf %244, %245 : vector<16x1xf32>
    %247 = math.rsqrt %246 : vector<16x1xf32>
    %248 = vector.broadcast %247 : vector<16x1xf32> to vector<16x64xf32>
    %249 = arith.mulf %239, %248 : vector<16x64xf32>
    %c0_150 = arith.constant 0 : index
    %c0_151 = arith.constant 0 : index
    %250 = vector.load %arg11[%c0_150, %c0_151] : memref<1x64xf32, #tpu.memory_space<vmem>>, vector<1x64xf32>
    %251 = vector.broadcast %250 : vector<1x64xf32> to vector<16x64xf32>
    %252 = arith.mulf %249, %251 : vector<16x64xf32>
    %253 = arith.truncf %252 : vector<16x64xf32> to vector<16x64xbf16>
    %c0_152 = arith.constant 0 : index
    %c0_153 = arith.constant 0 : index
    %254 = vector.load %arg12[%c0_152, %c0_153] : memref<64x256xbf16, #tpu.memory_space<vmem>>, vector<64x256xbf16>
    %cst_154 = arith.constant dense<0.000000e+00> : vector<16x256xf32>
    %255 = tpu.matmul %253, %254, %cst_154 {dimension_numbers = #tpu.dot_dimension_numbers<[1], [0], [0], [1], [0, 0, 1, 1], [], []>} : vector<16x64xbf16>, vector<64x256xbf16>, vector<16x256xf32> -> vector<16x256xf32>
    %256 = vector.extract_strided_slice %255 {offsets = [0, 0], sizes = [16, 128], strides = [1, 1]} : vector<16x256xf32> to vector<16x128xf32>
    %257 = vector.extract_strided_slice %255 {offsets = [0, 128], sizes = [16, 128], strides = [1, 1]} : vector<16x256xf32> to vector<16x128xf32>
    %258 = arith.negf %256 : vector<16x128xf32>
    %259 = math.exp %258 : vector<16x128xf32>
    %cst_155 = arith.constant 1.000000e+00 : f32
    %260 = vector.broadcast %cst_155 : f32 to vector<16x128xf32>
    %261 = arith.addf %260, %259 : vector<16x128xf32>
    %262 = arith.divf %260, %261 : vector<16x128xf32>
    %263 = arith.mulf %256, %262 : vector<16x128xf32>
    %264 = arith.mulf %263, %257 : vector<16x128xf32>
    %265 = arith.truncf %264 : vector<16x128xf32> to vector<16x128xbf16>
    %c0_156 = arith.constant 0 : index
    %c0_157 = arith.constant 0 : index
    %266 = vector.load %arg13[%c0_156, %c0_157] : memref<128x64xbf16, #tpu.memory_space<vmem>>, vector<128x64xbf16>
    %cst_158 = arith.constant dense<0.000000e+00> : vector<16x64xf32>
    %267 = tpu.matmul %265, %266, %cst_158 {dimension_numbers = #tpu.dot_dimension_numbers<[1], [0], [0], [1], [0, 0, 1, 1], [], []>} : vector<16x128xbf16>, vector<128x64xbf16>, vector<16x64xf32> -> vector<16x64xf32>
    %268 = arith.addf %239, %267 : vector<16x64xf32>
    %c0_159 = arith.constant 0 : index
    %c0_160 = arith.constant 0 : index
    %269 = vector.load %arg14[%c0_159, %c0_160] : memref<64x64xf32, #tpu.memory_space<vmem>>, vector<64x64xf32>
    %270 = vector.extract_strided_slice %268 {offsets = [0, 0], sizes = [8, 64], strides = [1, 1]} : vector<16x64xf32> to vector<8x64xf32>
    %cst_161 = arith.constant dense<0.000000e+00> : vector<64x8xf32>
    %271 = tpu.matmul %269, %270, %cst_161 {dimension_numbers = #tpu.dot_dimension_numbers<[1], [1], [0], [0], [0, 0, 1, 0], [], []>} : vector<64x64xf32>, vector<8x64xf32>, vector<64x8xf32> -> vector<64x8xf32>
    %c0_162 = arith.constant 0 : index
    %c0_163 = arith.constant 0 : index
    %c0_164 = arith.constant 0 : index
    %272 = vector.load %arg15[%c0_162, %c0_163, %c0_164] : memref<2x64x8xf32, #tpu.memory_space<vmem>>, vector<1x64x8xf32>
    %273 = vector.shape_cast %272 : vector<1x64x8xf32> to vector<64x8xf32>
    %274 = vector.shape_cast %271 : vector<64x8xf32> to vector<1x64x8xf32>
    tpu.vector_store %arg15[%c0_162, %c0_163, %c0_164], %274 {strides = array<i32>} : memref<2x64x8xf32, #tpu.memory_space<vmem>>, vector<1x64x8xf32>,
    %c0_165 = arith.constant 0 : index
    %c0_166 = arith.constant 0 : index
    %275 = vector.load %arg14[%c0_165, %c0_166] : memref<64x64xf32, #tpu.memory_space<vmem>>, vector<64x64xf32>
    %276 = vector.extract_strided_slice %268 {offsets = [8, 0], sizes = [8, 64], strides = [1, 1]} : vector<16x64xf32> to vector<8x64xf32>
    %cst_167 = arith.constant dense<0.000000e+00> : vector<64x8xf32>
    %277 = tpu.matmul %275, %276, %cst_167 {dimension_numbers = #tpu.dot_dimension_numbers<[1], [1], [0], [0], [0, 0, 1, 0], [], []>} : vector<64x64xf32>, vector<8x64xf32>, vector<64x8xf32> -> vector<64x8xf32>
    %c1_168 = arith.constant 1 : index
    %c0_169 = arith.constant 0 : index
    %c0_170 = arith.constant 0 : index
    %278 = vector.load %arg15[%c1_168, %c0_169, %c0_170] : memref<2x64x8xf32, #tpu.memory_space<vmem>>, vector<1x64x8xf32>
    %279 = vector.shape_cast %278 : vector<1x64x8xf32> to vector<64x8xf32>
    %280 = vector.shape_cast %277 : vector<64x8xf32> to vector<1x64x8xf32>
    tpu.vector_store %arg15[%c1_168, %c0_169, %c0_170], %280 {strides = array<i32>} : memref<2x64x8xf32, #tpu.memory_space<vmem>>, vector<1x64x8xf32>,
    return
  }
}

</mosaic_0001>

<llo_original>
// kernel: qwen2_decoder_layer.1
$region0: #{qwen2_decoder_layer.1}
  #allocation0 [shape = 'u32[]', space=smem, size = 0x4, offset = 0x4, fixed_abs, tag = 'smem constant byte address 0x4 - core index']
  #allocation1 [shape = 'u32[144,128]{1,0:T(1,128)}', space=vmem, size = 0x12000, scoped, tag = 'internal scratch']
  %s0 = inlined_call_operand.vmem [shape: f32[2,64,8], index: 0, kind: input, shape index: {}]
  %s1 = inlined_call_operand.vmem [shape: f32[1,64], index: 1, kind: input, shape index: {}]
  %s2 = inlined_call_operand.vmem [shape: bf16[64,128], index: 2, kind: input, shape index: {}]
  %s3 = inlined_call_operand.vmem [shape: f32[1,128], index: 3, kind: input, shape index: {}]
  %s4 = inlined_call_operand.vmem [shape: f32[16,128], index: 4, kind: input, shape index: {}]
  %s5 = inlined_call_operand.vmem [shape: f32[16,128], index: 5, kind: input, shape index: {}]
  %s6 = inlined_call_operand.vmem [shape: f32[128,128], index: 6, kind: input, shape index: {}]
  %s7 = inlined_call_operand.vmem [shape: f32[8,8], index: 7, kind: input, shape index: {}]
  %s8 = inlined_call_operand.vmem [shape: f32[2,2,2,4,16], index: 8, kind: input, shape index: {}]
  %s9 = inlined_call_operand.vmem [shape: f32[2,8,12], index: 9, kind: input, shape index: {}]
  %s10 = inlined_call_operand.vmem [shape: bf16[64,64], index: 10, kind: input, shape index: {}]
  %s11 = inlined_call_operand.vmem [shape: f32[1,64], index: 11, kind: input, shape index: {}]
  %s12 = inlined_call_operand.vmem [shape: bf16[64,256], index: 12, kind: input, shape index: {}]
  %s13 = inlined_call_operand.vmem [shape: bf16[128,64], index: 13, kind: input, shape index: {}]
  %s14 = inlined_call_operand.vmem [shape: f32[64,64], index: 14, kind: input, shape index: {}]
  %s15 = inlined_call_operand.vmem [shape: f32[2,64,8], index: 15, kind: output, shape index: {0}]
  %s16 = inlined_call_operand.vmem [shape: f32[2,2,2,12,16], index: 16, kind: output, shape index: {1}]
  %17 = xla_tuple %s15, %s16
  %s18 = sld [smem:[#allocation0]]
  $region78: #{qwen2_decoder_layer.1} parent=0
    _
  %s20 = ssub.s32 1, %s18
  %s21 = scalar_select 0, %s20, %s18
  // Predicated region
  $region2: #{qwen2_decoder_layer.1} parent=0 // pred_check
    _
  $region3: #{qwen2_decoder_layer.1} parent=0 // pred_check_branch
    %23 = sbr.rel (0) target = $region5
  $region4: #{qwen2_decoder_layer.1} parent=0 // pred_region
    _
  $region5: #{qwen2_decoder_layer.1} parent=0 // pred_fallthru
    _
  // Predicated region
  $region6: #{qwen2_decoder_layer.1} parent=0 // pred_check
    _
  $region7: #{qwen2_decoder_layer.1} parent=0 // pred_check_branch
    %25 = sbr.rel (0) target = $region9
  $region8: #{qwen2_decoder_layer.1} parent=0 // pred_region
    _
  $region9: #{qwen2_decoder_layer.1} parent=0 // pred_fallthru
    _
  // Predicated region
  $region10: #{qwen2_decoder_layer.1} parent=0 // pred_check
    _
  $region11: #{qwen2_decoder_layer.1} parent=0 // pred_check_branch
    %27 = sbr.rel (0) target = $region13
  $region12: #{qwen2_decoder_layer.1} parent=0 // pred_region
    _
  $region13: #{qwen2_decoder_layer.1} parent=0 // pred_fallthru
    _
  // Predicated region
  $region14: #{qwen2_decoder_layer.1} parent=0 // pred_check
    _
  $region15: #{qwen2_decoder_layer.1} parent=0 // pred_check_branch
    %29 = sbr.rel (0) target = $region17
  $region16: #{qwen2_decoder_layer.1} parent=0 // pred_region
    _
  $region17: #{qwen2_decoder_layer.1} parent=0 // pred_fallthru
    _
  // Predicated region
  $region18: #{qwen2_decoder_layer.1} parent=0 // pred_check
    _
  $region19: #{qwen2_decoder_layer.1} parent=0 // pred_check_branch
    %31 = sbr.rel (0) target = $region21
  $region20: #{qwen2_decoder_layer.1} parent=0 // pred_region
    _
  $region21: #{qwen2_decoder_layer.1} parent=0 // pred_fallthru
    _
  // Predicated region
  $region22: #{qwen2_decoder_layer.1} parent=0 // pred_check
    _
  $region23: #{qwen2_decoder_layer.1} parent=0 // pred_check_branch
    %33 = sbr.rel (0) target = $region25
  $region24: #{qwen2_decoder_layer.1} parent=0 // pred_region
    _
  $region25: #{qwen2_decoder_layer.1} parent=0 // pred_fallthru
    _
  // Predicated region
  $region26: #{qwen2_decoder_layer.1} parent=0 // pred_check
    _
  $region27: #{qwen2_decoder_layer.1} parent=0 // pred_check_branch
    %35 = sbr.rel (0) target = $region29
  $region28: #{qwen2_decoder_layer.1} parent=0 // pred_region
    _
  $region29: #{qwen2_decoder_layer.1} parent=0 // pred_fallthru
    _
  // Predicated region
  $region30: #{qwen2_decoder_layer.1} parent=0 // pred_check
    _
  $region31: #{qwen2_decoder_layer.1} parent=0 // pred_check_branch
    %37 = sbr.rel (0) target = $region33
  $region32: #{qwen2_decoder_layer.1} parent=0 // pred_region
    _
  $region33: #{qwen2_decoder_layer.1} parent=0 // pred_fallthru
    _
  // Predicated region
  $region34: #{qwen2_decoder_layer.1} parent=0 // pred_check
    _
  $region35: #{qwen2_decoder_layer.1} parent=0 // pred_check_branch
    %39 = sbr.rel (0) target = $region37
  $region36: #{qwen2_decoder_layer.1} parent=0 // pred_region
    _
  $region37: #{qwen2_decoder_layer.1} parent=0 // pred_fallthru
    _
  // Predicated region
  $region38: #{qwen2_decoder_layer.1} parent=0 // pred_check
    _
  $region39: #{qwen2_decoder_layer.1} parent=0 // pred_check_branch
    %41 = sbr.rel (0) target = $region41
  $region40: #{qwen2_decoder_layer.1} parent=0 // pred_region
    _
  $region41: #{qwen2_decoder_layer.1} parent=0 // pred_fallthru
    _
  // Predicated region
  $region42: #{qwen2_decoder_layer.1} parent=0 // pred_check
    _
  $region43: #{qwen2_decoder_layer.1} parent=0 // pred_check_branch
    %43 = sbr.rel (0) target = $region45
  $region44: #{qwen2_decoder_layer.1} parent=0 // pred_region
    _
  $region45: #{qwen2_decoder_layer.1} parent=0 // pred_fallthru
    _
  // Predicated region
  $region46: #{qwen2_decoder_layer.1} parent=0 // pred_check
    _
  $region47: #{qwen2_decoder_layer.1} parent=0 // pred_check_branch
    %45 = sbr.rel (0) target = $region49
  $region48: #{qwen2_decoder_layer.1} parent=0 // pred_region
    _
  $region49: #{qwen2_decoder_layer.1} parent=0 // pred_fallthru
    _
  // Predicated region
  $region50: #{qwen2_decoder_layer.1} parent=0 // pred_check
    _
  $region51: #{qwen2_decoder_layer.1} parent=0 // pred_check_branch
    %47 = sbr.rel (0) target = $region53
  $region52: #{qwen2_decoder_layer.1} parent=0 // pred_region
    _
  $region53: #{qwen2_decoder_layer.1} parent=0 // pred_fallthru
    _
  // Predicated region
  $region54: #{qwen2_decoder_layer.1} parent=0 // pred_check
    _
  $region55: #{qwen2_decoder_layer.1} parent=0 // pred_check_branch
    %49 = sbr.rel (0) target = $region57
  $region56: #{qwen2_decoder_layer.1} parent=0 // pred_region
    _
  $region57: #{qwen2_decoder_layer.1} parent=0 // pred_fallthru
    _
  // Predicated region
  $region58: #{qwen2_decoder_layer.1} parent=0 // pred_check
    _
  $region59: #{qwen2_decoder_layer.1} parent=0 // pred_check_branch
    %51 = sbr.rel (0) target = $region61
  $region60: #{qwen2_decoder_layer.1} parent=0 // pred_region
    _
  $region61: #{qwen2_decoder_layer.1} parent=0 // pred_fallthru
    _
  %v53 = vld [vmem:[%s7] sm:$0xff]
  %v54 = vld [vmem:[%s0] sm:$0xff]
  %v55 = vld [vmem:[%s0 + $0x8] sm:$0xff]
  %v56 = vld [vmem:[%s0 + $0x10] sm:$0xff]
  %v57 = vld [vmem:[%s0 + $0x18] sm:$0xff]
  %v58 = vld [vmem:[%s0 + $0x20] sm:$0xff]
  %v59 = vld [vmem:[%s0 + $0x28] sm:$0xff]
  %v60 = vld [vmem:[%s0 + $0x30] sm:$0xff]
  %v61 = vld [vmem:[%s0 + $0x38] sm:$0xff]
  %vm62 = vcmask 64512
  %v64 = vsel %vm62, %v53, 0
  %v67 = vsel %vm62, %v54, 0
  %v70 = vsel %vm62, %v55, 0
  %v73 = vsel %vm62, %v56, 0
  %v76 = vsel %vm62, %v57, 0
  %v79 = vsel %vm62, %v58, 0
  %v82 = vsel %vm62, %v59, 0
  %v85 = vsel %vm62, %v60, 0
  %v88 = vsel %vm62, %v61, 0
  %90 = vmatprep.subr.mxu0 0.0
  %91 = vmatpush1.xpose.msra.mxu0 %v67
  %92 = vmatprep.subr.mxu0 0.0
  %93 = vmatpush1.xpose.msra.mxu0 %v70
  %94 = vmatprep.subr.mxu0 0.0
  %95 = vmatpush1.xpose.msra.mxu0 %v73
  %96 = vmatprep.subr.mxu0 0.0
  %97 = vmatpush1.xpose.msra.mxu0 %v76
  %98 = vmatprep.subr.mxu0 0.0
  %99 = vmatpush1.xpose.msra.mxu0 %v79
  %100 = vmatprep.subr.mxu0 0.0
  %101 = vmatpush1.xpose.msra.mxu0 %v82
  %102 = vmatprep.subr.mxu0 0.0
  %103 = vmatpush1.xpose.msra.mxu0 %v85
  %104 = vmatprep.subr.mxu0 0.0
  %105 = vmatpush1.xpose.msra.mxu0 %v88
  %106 = vmatprep.subr.mxu0 0.0
  %107 = vmatpush1.xpose.msra.mxu0 0.0
  %108 = vmatprep.subr.mxu0 0.0
  %109 = vmatpush1.xpose.msra.mxu0 0.0
  %110 = vmatprep.subr.mxu0 0.0
  %111 = vmatpush1.xpose.msra.mxu0 0.0
  %112 = vmatprep.subr.mxu0 0.0
  %113 = vmatpush1.xpose.msra.mxu0 0.0
  %114 = vmatprep.subr.mxu0 0.0
  %115 = vmatpush1.xpose.msra.mxu0 0.0
  %116 = vmatprep.subr.mxu0 0.0
  %117 = vmatpush1.xpose.msra.mxu0 0.0
  %118 = vmatprep.subr.mxu0 0.0
  %119 = vmatpush1.xpose.msra.mxu0 0.0
  %120 = vmatprep.subr.mxu0 0.0
  %121 = vmatpush1.xpose.msra.mxu0 0.0
  %122 = vmatprep.subr.mxu0 0.0
  %123 = vmatpush1.xpose.msra.mxu0 0.0
  %124 = vmatprep.subr.mxu0 0.0
  %125 = vmatpush1.xpose.msra.mxu0 0.0
  %126 = vmatprep.subr.mxu0 0.0
  %127 = vmatpush1.xpose.msra.mxu0 0.0
  %128 = vmatprep.subr.mxu0 0.0
  %129 = vmatpush1.xpose.msra.mxu0 0.0
  %130 = vmatprep.subr.mxu0 0.0
  %131 = vmatpush1.xpose.msra.mxu0 0.0
  %132 = vmatprep.subr.mxu0 0.0
  %133 = vmatpush1.xpose.msra.mxu0 0.0
  %134 = vmatprep.subr.mxu0 0.0
  %135 = vmatpush1.xpose.msra.mxu0 0.0
  %136 = vmatprep.subr.mxu0 0.0
  %137 = vmatpush1.xpose.msra.mxu0 0.0
  %138 = vmatprep.subr.mxu0 0.0
  %139 = vmatpush1.xpose.msra.mxu0 0.0
  %140 = vmatprep.subr.mxu0 0.0
  %141 = vmatpush1.xpose.msra.mxu0 0.0
  %142 = vmatprep.subr.mxu0 0.0
  %143 = vmatpush1.xpose.msra.mxu0 0.0
  %144 = vmatprep.subr.mxu0 0.0
  %145 = vmatpush1.xpose.msra.mxu0 0.0
  %146 = vmatprep.subr.mxu0 0.0
  %147 = vmatpush1.xpose.msra.mxu0 0.0
  %148 = vmatprep.subr.mxu0 0.0
  %149 = vmatpush1.xpose.msra.mxu0 0.0
  %150 = vmatprep.subr.mxu0 0.0
  %151 = vmatpush1.xpose.msra.mxu0 0.0
  %152 = vmatprep.subr.mxu0 0.0
  %153 = vmatpush1.xpose.msra.mxu0 0.0
  %154 = vmatprep.mubr.f32.mxu0 0.0
  %155 = vmatmul.mubr.f32.gmra.mrb[0].mxu0 %v64
  %v156 = vpop.f32.mrb[0].mxu0
  %v157 = vadd.f32 0.0, %v156
  %v158 = vpop.f32.mrb[0].mxu0
  %159 = vdwg.mxu0
  %s160 = scalar_lea.vmem %s0, 64
  %v161 = vld [vmem:[%s160] sm:$0xff]
  %v162 = vld [vmem:[%s160 + $0x8] sm:$0xff]
  %v163 = vld [vmem:[%s160 + $0x10] sm:$0xff]
  %v164 = vld [vmem:[%s160 + $0x18] sm:$0xff]
  %v165 = vld [vmem:[%s160 + $0x20] sm:$0xff]
  %v166 = vld [vmem:[%s160 + $0x28] sm:$0xff]
  %v167 = vld [vmem:[%s160 + $0x30] sm:$0xff]
  %v168 = vld [vmem:[%s160 + $0x38] sm:$0xff]
  %v170 = vsel %vm62, %v161, 0
  %v173 = vsel %vm62, %v162, 0
  %v176 = vsel %vm62, %v163, 0
  %v179 = vsel %vm62, %v164, 0
  %v182 = vsel %vm62, %v165, 0
  %v185 = vsel %vm62, %v166, 0
  %v188 = vsel %vm62, %v167, 0
  %v191 = vsel %vm62, %v168, 0
  %193 = vmatprep.subr.mxu0 0.0
  %194 = vmatpush1.xpose.msra.mxu0 %v170
  %195 = vmatprep.subr.mxu0 0.0
  %196 = vmatpush1.xpose.msra.mxu0 %v173
  %197 = vmatprep.subr.mxu0 0.0
  %198 = vmatpush1.xpose.msra.mxu0 %v176
  %199 = vmatprep.subr.mxu0 0.0
  %200 = vmatpush1.xpose.msra.mxu0 %v179
  %201 = vmatprep.subr.mxu0 0.0
  %202 = vmatpush1.xpose.msra.mxu0 %v182
  %203 = vmatprep.subr.mxu0 0.0
  %204 = vmatpush1.xpose.msra.mxu0 %v185
  %205 = vmatprep.subr.mxu0 0.0
  %206 = vmatpush1.xpose.msra.mxu0 %v188
  %207 = vmatprep.subr.mxu0 0.0
  %208 = vmatpush1.xpose.msra.mxu0 %v191
  %209 = vmatprep.subr.mxu0 0.0
  %210 = vmatpush1.xpose.msra.mxu0 0.0
  %211 = vmatprep.subr.mxu0 0.0
  %212 = vmatpush1.xpose.msra.mxu0 0.0
  %213 = vmatprep.subr.mxu0 0.0
  %214 = vmatpush1.xpose.msra.mxu0 0.0
  %215 = vmatprep.subr.mxu0 0.0
  %216 = vmatpush1.xpose.msra.mxu0 0.0
  %217 = vmatprep.subr.mxu0 0.0
  %218 = vmatpush1.xpose.msra.mxu0 0.0
  %219 = vmatprep.subr.mxu0 0.0
  %220 = vmatpush1.xpose.msra.mxu0 0.0
  %221 = vmatprep.subr.mxu0 0.0
  %222 = vmatpush1.xpose.msra.mxu0 0.0
  %223 = vmatprep.subr.mxu0 0.0
  %224 = vmatpush1.xpose.msra.mxu0 0.0
  %225 = vmatprep.subr.mxu0 0.0
  %226 = vmatpush1.xpose.msra.mxu0 0.0
  %227 = vmatprep.subr.mxu0 0.0
  %228 = vmatpush1.xpose.msra.mxu0 0.0
  %229 = vmatprep.subr.mxu0 0.0
  %230 = vmatpush1.xpose.msra.mxu0 0.0
  %231 = vmatprep.subr.mxu0 0.0
  %232 = vmatpush1.xpose.msra.mxu0 0.0
  %233 = vmatprep.subr.mxu0 0.0
  %234 = vmatpush1.xpose.msra.mxu0 0.0
  %235 = vmatprep.subr.mxu0 0.0
  %236 = vmatpush1.xpose.msra.mxu0 0.0
  %237 = vmatprep.subr.mxu0 0.0
  %238 = vmatpush1.xpose.msra.mxu0 0.0
  %239 = vmatprep.subr.mxu0 0.0
  %240 = vmatpush1.xpose.msra.mxu0 0.0
  %241 = vmatprep.subr.mxu0 0.0
  %242 = vmatpush1.xpose.msra.mxu0 0.0
  %243 = vmatprep.subr.mxu0 0.0
  %244 = vmatpush1.xpose.msra.mxu0 0.0
  %245 = vmatprep.subr.mxu0 0.0
  %246 = vmatpush1.xpose.msra.mxu0 0.0
  %247 = vmatprep.subr.mxu0 0.0
  %248 = vmatpush1.xpose.msra.mxu0 0.0
  %249 = vmatprep.subr.mxu0 0.0
  %250 = vmatpush1.xpose.msra.mxu0 0.0
  %251 = vmatprep.subr.mxu0 0.0
  %252 = vmatpush1.xpose.msra.mxu0 0.0
  %253 = vmatprep.subr.mxu0 0.0
  %254 = vmatpush1.xpose.msra.mxu0 0.0
  %255 = vmatprep.subr.mxu0 0.0
  %256 = vmatpush1.xpose.msra.mxu0 0.0
  %257 = vmatprep.mubr.f32.mxu0 0.0
  %258 = vmatmul.mubr.f32.gmra.mrb[0].mxu0 %v64
  %v259 = vpop.f32.mrb[0].mxu0
  %v260 = vadd.f32 0.0, %v259
  %v261 = vpop.f32.mrb[0].mxu0
  %262 = vdwg.mxu0
  %v263 = vmul.f32 %v157, %v157
  %v264 = vmul.f32 %v260, %v260
  %vm265 = vcmask 523264
  %v266 = vsel %vm265, %v263, 0.0
  %267 = vadd.xlane.f32.xlu0 %v266
  %v268 = vpop.xlane.xlu0 %267
  %v269 = vsel %vm265, %v264, 0.0
  %270 = vadd.xlane.f32.xlu0 %v269
  %v271 = vpop.xlane.xlu0 %270
  %v272 = vrcp.pop 64.0
  %v273 = vmul.f32 %v268, %v272
  %v274 = vmul.f32 %v271, %v272
  %v275 = vadd.f32 %v273, 1e-06
  %v276 = vadd.f32 %v274, 1e-06
  %v277 = vrsqrt.pop %v275
  %v278 = vrsqrt.pop %v276
  %v279 = vmul.f32 %v157, %v277
  %v280 = vmul.f32 %v260, %v278
  %v281 = vld [vmem:[%s1] sm:$0x1]
  %v283 = vlaneseq
  %v284 = vshrl.u32 %v283, 7
  %v285 = vsub.s32 0, %v284
  %v286 = vrot.slane %v281, %v285
  %v288 = vmul.f32 %v279, %v286
  %v289 = vmul.f32 %v280, %v286
  %v290 = vpack.c.bf16 %v289, %v288
  %v291 = vld [vmem:[%s2] sm:$0xf]
  %v292 = vld [vmem:[%s2 + $0x4] sm:$0xf]
  %v293 = vld [vmem:[%s2 + $0x8] sm:$0xf]
  %v294 = vld [vmem:[%s2 + $0xc] sm:$0xf]
  %v295 = vld [vmem:[%s2 + $0x10] sm:$0xf]
  %v296 = vld [vmem:[%s2 + $0x14] sm:$0xf]
  %v297 = vld [vmem:[%s2 + $0x18] sm:$0xf]
  %v298 = vld [vmem:[%s2 + $0x1c] sm:$0xf]
  %v299 = vld [vmem:[%s3] sm:$0x1]
  %v301 = vlaneseq
  %v302 = vshrl.u32 %v301, 7
  %v303 = vsub.s32 0, %v302
  %v304 = vrot.slane %v299, %v303
  %v314 = vunpack.c.l.b16 %v291
  %v315 = vunpack.c.l.b16 %v292
  %v316 = vunpack.c.l.b16 %v293
  %v317 = vunpack.c.l.b16 %v294
  %v318 = vunpack.c.l.b16 %v295
  %v319 = vunpack.c.l.b16 %v296
  %v320 = vunpack.c.l.b16 %v297
  %v321 = vunpack.c.l.b16 %v298
  %v322 = vpack.c.b16 %v315, %v314
  %v323 = vpack.c.b16 %v317, %v316
  %v324 = vpack.c.b16 %v319, %v318
  %v325 = vpack.c.b16 %v321, %v320
  %v331 = vsel %vm265, %v290, 0
  %333 = vmatprep.subr.bf16.mxu0 0
  %334 = vmatpush1.bf16.msra.mxu0 %v322
  %335 = vmatprep.subr.bf16.mxu0 0
  %336 = vmatpush1.bf16.msra.mxu0 %v323
  %337 = vmatprep.subr.bf16.mxu0 0
  %338 = vmatpush1.bf16.msra.mxu0 %v324
  %339 = vmatprep.subr.bf16.mxu0 0
  %340 = vmatpush1.bf16.msra.mxu0 %v325
  %341 = vmatprep.subr.bf16.mxu0 0
  %342 = vmatpush1.bf16.msra.mxu0 0
  %343 = vmatprep.subr.bf16.mxu0 0
  %344 = vmatpush1.bf16.msra.mxu0 0
  %345 = vmatprep.subr.bf16.mxu0 0
  %346 = vmatpush1.bf16.msra.mxu0 0
  %347 = vmatprep.subr.bf16.mxu0 0
  %348 = vmatpush1.bf16.msra.mxu0 0
  %349 = vmatprep.subr.bf16.mxu0 0
  %350 = vmatpush1.bf16.msra.mxu0 0
  %351 = vmatprep.subr.bf16.mxu0 0
  %352 = vmatpush1.bf16.msra.mxu0 0
  %353 = vmatprep.subr.bf16.mxu0 0
  %354 = vmatpush1.bf16.msra.mxu0 0
  %355 = vmatprep.subr.bf16.mxu0 0
  %356 = vmatpush1.bf16.msra.mxu0 0
  %357 = vmatprep.subr.bf16.mxu0 0
  %358 = vmatpush1.bf16.msra.mxu0 0
  %359 = vmatprep.subr.bf16.mxu0 0
  %360 = vmatpush1.bf16.msra.mxu0 0
  %361 = vmatprep.subr.bf16.mxu0 0
  %362 = vmatpush1.bf16.msra.mxu0 0
  %363 = vmatprep.subr.bf16.mxu0 0
  %364 = vmatpush1.bf16.msra.mxu0 0
  %365 = vmatprep.mubr.bf16.mxu0 0
  %366 = vmatmul.mubr.bf16.gmra.mrb[0].mxu0 %v331
  %v367 = vpop.f32.mrb[0].mxu0
  %v368 = vadd.f32 %v304, %v367
  %v369 = vpop.f32.mrb[0].mxu0
  %v370 = vpop.f32.mrb[0].mxu0
  %v371 = vadd.f32 %v304, %v370
  %v372 = vpop.f32.mrb[0].mxu0
  %373 = vdwg.mxu0
  %v374 = vld [vmem:[%s6] sm:$0xff]
  %v375 = vld [vmem:[%s6 + $0x8] sm:$0xff]
  %v376 = vld [vmem:[%s6 + $0x10] sm:$0xff]
  %v377 = vld [vmem:[%s6 + $0x18] sm:$0xff]
  %v378 = vld [vmem:[%s6 + $0x20] sm:$0xff]
  %v379 = vld [vmem:[%s6 + $0x28] sm:$0xff]
  %v380 = vld [vmem:[%s6 + $0x30] sm:$0xff]
  %v381 = vld [vmem:[%s6 + $0x38] sm:$0xff]
  %v382 = vld [vmem:[%s6 + $0x40] sm:$0xff]
  %v383 = vld [vmem:[%s6 + $0x48] sm:$0xff]
  %v384 = vld [vmem:[%s6 + $0x50] sm:$0xff]
  %v385 = vld [vmem:[%s6 + $0x58] sm:$0xff]
  %v386 = vld [vmem:[%s6 + $0x60] sm:$0xff]
  %v387 = vld [vmem:[%s6 + $0x68] sm:$0xff]
  %v388 = vld [vmem:[%s6 + $0x70] sm:$0xff]
  %v389 = vld [vmem:[%s6 + $0x78] sm:$0xff]
  %390 = vmatprep.subr.mxu0 0.0
  %391 = vmatpush1.msra.mxu0 %v374
  %392 = vmatprep.subr.mxu0 0.0
  %393 = vmatpush1.msra.mxu0 %v375
  %394 = vmatprep.subr.mxu0 0.0
  %395 = vmatpush1.msra.mxu0 %v376
  %396 = vmatprep.subr.mxu0 0.0
  %397 = vmatpush1.msra.mxu0 %v377
  %398 = vmatprep.subr.mxu0 0.0
  %399 = vmatpush1.msra.mxu0 %v378
  %400 = vmatprep.subr.mxu0 0.0
  %401 = vmatpush1.msra.mxu0 %v379
  %402 = vmatprep.subr.mxu0 0.0
  %403 = vmatpush1.msra.mxu0 %v380
  %404 = vmatprep.subr.mxu0 0.0
  %405 = vmatpush1.msra.mxu0 %v381
  %406 = vmatprep.subr.mxu0 0.0
  %407 = vmatpush1.msra.mxu0 %v382
  %408 = vmatprep.subr.mxu0 0.0
  %409 = vmatpush1.msra.mxu0 %v383
  %410 = vmatprep.subr.mxu0 0.0
  %411 = vmatpush1.msra.mxu0 %v384
  %412 = vmatprep.subr.mxu0 0.0
  %413 = vmatpush1.msra.mxu0 %v385
  %414 = vmatprep.subr.mxu0 0.0
  %415 = vmatpush1.msra.mxu0 %v386
  %416 = vmatprep.subr.mxu0 0.0
  %417 = vmatpush1.msra.mxu0 %v387
  %418 = vmatprep.subr.mxu0 0.0
  %419 = vmatpush1.msra.mxu0 %v388
  %420 = vmatprep.subr.mxu0 0.0
  %421 = vmatpush1.msra.mxu0 %v389
  %422 = vmatprep.subr.mxu0 0.0
  %423 = vmatpush1.msra.mxu0 0.0
  %424 = vmatprep.subr.mxu0 0.0
  %425 = vmatpush1.msra.mxu0 0.0
  %426 = vmatprep.subr.mxu0 0.0
  %427 = vmatpush1.msra.mxu0 0.0
  %428 = vmatprep.subr.mxu0 0.0
  %429 = vmatpush1.msra.mxu0 0.0
  %430 = vmatprep.subr.mxu0 0.0
  %431 = vmatpush1.msra.mxu0 0.0
  %432 = vmatprep.subr.mxu0 0.0
  %433 = vmatpush1.msra.mxu0 0.0
  %434 = vmatprep.subr.mxu0 0.0
  %435 = vmatpush1.msra.mxu0 0.0
  %436 = vmatprep.subr.mxu0 0.0
  %437 = vmatpush1.msra.mxu0 0.0
  %438 = vmatprep.subr.mxu0 0.0
  %439 = vmatpush1.msra.mxu0 0.0
  %440 = vmatprep.subr.mxu0 0.0
  %441 = vmatpush1.msra.mxu0 0.0
  %442 = vmatprep.subr.mxu0 0.0
  %443 = vmatpush1.msra.mxu0 0.0
  %444 = vmatprep.subr.mxu0 0.0
  %445 = vmatpush1.msra.mxu0 0.0
  %446 = vmatprep.subr.mxu0 0.0
  %447 = vmatpush1.msra.mxu0 0.0
  %448 = vmatprep.subr.mxu0 0.0
  %449 = vmatpush1.msra.mxu0 0.0
  %450 = vmatprep.subr.mxu0 0.0
  %451 = vmatpush1.msra.mxu0 0.0
  %452 = vmatprep.subr.mxu0 0.0
  %453 = vmatpush1.msra.mxu0 0.0
  %454 = vmatprep.mubr.f32.mxu0 0.0
  %455 = vmatmul.mubr.f32.gmra.mrb[0].mxu0 %v368
  %v456 = vpop.f32.mrb[0].mxu0
  %v457 = vadd.f32 0.0, %v456
  %v458 = vpop.f32.mrb[0].mxu0
  %459 = vmatprep.mubr.f32.mxu0 0.0
  %460 = vmatmul.mubr.f32.gmra.mrb[0].mxu0 %v371
  %v461 = vpop.f32.mrb[0].mxu0
  %v462 = vadd.f32 0.0, %v461
  %v463 = vpop.f32.mrb[0].mxu0
  %464 = vdwg.mxu0
  %v465 = vld [vmem:[%s4] sm:$0xff]
  %v466 = vld [vmem:[%s4 + $0x8] sm:$0xff]
  %v467 = vmul.f32 %v368, %v465
  %v468 = vmul.f32 %v371, %v466
  %v469 = vld [vmem:[%s5] sm:$0xff]
  %v470 = vld [vmem:[%s5 + $0x8] sm:$0xff]
  %v471 = vmul.f32 %v457, %v469
  %v472 = vmul.f32 %v462, %v470
  %v473 = vadd.f32 %v467, %v471
  %v474 = vadd.f32 %v468, %v472
  %v475 = vld [vmem:[%s9] sm:$0xff]
  %v476 = vld [vmem:[%s8] sm:$0xf]
  %v478 = vrot.slane %v473, 4
  %479 = vrot.lane.b32.xlu0 %v478, 64
  %v480 = vpop.permute.xlu0 %479
  %vm482 = vcmask 1043456
  %v483 = vsel %vm482, %v476, %v480
  %s484 = scalar_lea.vmem %s8, 16
  %v485 = vld [vmem:[%s484] sm:$0xf]
  %486 = vrot.lane.b32.xlu0 %v478, 32
  %v487 = vpop.permute.xlu0 %486
  %v489 = vsel %vm482, %v485, %v487
  %vm490 = vcmask 130048
  %491 = vst.msk [vmem:[%s16] sm:$0xff] %vm490, %v483
  %vm492 = vcmask 125952
  %493 = vst.msk [vmem:[%s16 + $0x8] sm:$0xf] %vm492, %v480
  %s494 = scalar_lea.vmem %s16, 64
  %495 = vst.msk [vmem:[%s494] sm:$0xff] %vm490, %v489
  %496 = vst.msk [vmem:[%s494 + $0x8] sm:$0xf] %vm492, %v487
  %v497 = vpack.c.bf16 %v480, %v483
  %v498 = vpack.c.bf16 %v487, %v489
  %v499 = vpack.c.bf16 %v473, %v473
  %v501 = vsel %vm490, %v499, 0
  %v504 = vsel %vm490, %v497, 0
  %506 = vmatprep.subr.bf16.mxu0 0
  %507 = vmatpush1.bf16.xpose.msra.mxu0 %v504
  %508 = vmatprep.subr.bf16.mxu0 0
  %509 = vmatpush1.bf16.xpose.msra.mxu0 0
  %510 = vmatprep.subr.bf16.mxu0 0
  %511 = vmatpush1.bf16.xpose.msra.mxu0 0
  %512 = vmatprep.subr.bf16.mxu0 0
  %513 = vmatpush1.bf16.xpose.msra.mxu0 0
  %514 = vmatprep.subr.bf16.mxu0 0
  %515 = vmatpush1.bf16.xpose.msra.mxu0 0
  %516 = vmatprep.subr.bf16.mxu0 0
  %517 = vmatpush1.bf16.xpose.msra.mxu0 0
  %518 = vmatprep.subr.bf16.mxu0 0
  %519 = vmatpush1.bf16.xpose.msra.mxu0 0
  %520 = vmatprep.subr.bf16.mxu0 0
  %521 = vmatpush1.bf16.xpose.msra.mxu0 0
  %522 = vmatprep.subr.bf16.mxu0 0
  %523 = vmatpush1.bf16.xpose.msra.mxu0 0
  %524 = vmatprep.subr.bf16.mxu0 0
  %525 = vmatpush1.bf16.xpose.msra.mxu0 0
  %526 = vmatprep.subr.bf16.mxu0 0
  %527 = vmatpush1.bf16.xpose.msra.mxu0 0
  %528 = vmatprep.subr.bf16.mxu0 0
  %529 = vmatpush1.bf16.xpose.msra.mxu0 0
  %530 = vmatprep.subr.bf16.mxu0 0
  %531 = vmatpush1.bf16.xpose.msra.mxu0 0
  %532 = vmatprep.subr.bf16.mxu0 0
  %533 = vmatpush1.bf16.xpose.msra.mxu0 0
  %534 = vmatprep.subr.bf16.mxu0 0
  %535 = vmatpush1.bf16.xpose.msra.mxu0 0
  %536 = vmatprep.subr.bf16.mxu0 0
  %537 = vmatpush1.bf16.xpose.msra.mxu0 0
  %538 = vmatprep.mubr.bf16.mxu0 0
  %539 = vmatmul.mubr.bf16.gmra.mrb[0].mxu0 %v501
  %v540 = vpop.f32.mrb[0].mxu0
  %v541 = vadd.f32 %v475, %v540
  %v542 = vpop.f32.mrb[0].mxu0
  %v543 = vpop.f32.mrb[0].mxu0
  %v544 = vpop.f32.mrb[0].mxu0
  %545 = vdwg.mxu0
  %vm546 = vcmask 97280
  %v547 = vsel %vm546, %v541, -inf
  %548 = vmax.xlane.f32.xlu0 %v547
  %v549 = vpop.xlane.xlu0 %548
  %v550 = vsub.f32 %v541, %v549
  %v551 = vmul.f32 %v550, 1.442695
  %v552 = vpow.pop %v551
  %v553 = vsel %vm546, %v552, 0.0
  %554 = vadd.xlane.f32.xlu0 %v553
  %v555 = vpop.xlane.xlu0 %554
  %v556 = vrcp.pop %v555
  %v557 = vmul.f32 %v552, %v556
  %v558 = vpack.c.bf16 %v557, %v557
  %v560 = vsel %vm546, %v558, 0
  %vm562 = vcmask 1045504
  %v564 = vsel %vm562, %v498, 0
  %566 = vmatprep.subr.bf16.mxu0 0
  %567 = vmatpush1.bf16.msra.mxu0 %v564
  %568 = vmatprep.subr.bf16.mxu0 0
  %569 = vmatpush1.bf16.msra.mxu0 0
  %570 = vmatprep.subr.bf16.mxu0 0
  %571 = vmatpush1.bf16.msra.mxu0 0
  %572 = vmatprep.subr.bf16.mxu0 0
  %573 = vmatpush1.bf16.msra.mxu0 0
  %574 = vmatprep.subr.bf16.mxu0 0
  %575 = vmatpush1.bf16.msra.mxu0 0
  %576 = vmatprep.subr.bf16.mxu0 0
  %577 = vmatpush1.bf16.msra.mxu0 0
  %578 = vmatprep.subr.bf16.mxu0 0
  %579 = vmatpush1.bf16.msra.mxu0 0
  %580 = vmatprep.subr.bf16.mxu0 0
  %581 = vmatpush1.bf16.msra.mxu0 0
  %582 = vmatprep.subr.bf16.mxu0 0
  %583 = vmatpush1.bf16.msra.mxu0 0
  %584 = vmatprep.subr.bf16.mxu0 0
  %585 = vmatpush1.bf16.msra.mxu0 0
  %586 = vmatprep.subr.bf16.mxu0 0
  %587 = vmatpush1.bf16.msra.mxu0 0
  %588 = vmatprep.subr.bf16.mxu0 0
  %589 = vmatpush1.bf16.msra.mxu0 0
  %590 = vmatprep.subr.bf16.mxu0 0
  %591 = vmatpush1.bf16.msra.mxu0 0
  %592 = vmatprep.subr.bf16.mxu0 0
  %593 = vmatpush1.bf16.msra.mxu0 0
  %594 = vmatprep.subr.bf16.mxu0 0
  %595 = vmatpush1.bf16.msra.mxu0 0
  %596 = vmatprep.subr.bf16.mxu0 0
  %597 = vmatpush1.bf16.msra.mxu0 0
  %598 = vmatprep.mubr.bf16.mxu0 0
  %599 = vmatmul.mubr.bf16.gmra.mrb[0].mxu0 %v560
  %v600 = vpop.f32.mrb[0].mxu0
  %v601 = vadd.f32 0.0, %v600
  %v602 = vpop.f32.mrb[0].mxu0
  %v603 = vpop.f32.mrb[0].mxu0
  %v604 = vpop.f32.mrb[0].mxu0
  %605 = vdwg.mxu0
  %607 = vrot.lane.b32.xlu0 %v499, 112
  %v608 = vpop.permute.xlu0 %607
  %v610 = vsel %vm490, %v608, 0
  %612 = vmatprep.subr.bf16.mxu0 0
  %613 = vmatpush1.bf16.xpose.msra.mxu0 %v504
  %614 = vmatprep.subr.bf16.mxu0 0
  %615 = vmatpush1.bf16.xpose.msra.mxu0 0
  %616 = vmatprep.subr.bf16.mxu0 0
  %617 = vmatpush1.bf16.xpose.msra.mxu0 0
  %618 = vmatprep.subr.bf16.mxu0 0
  %619 = vmatpush1.bf16.xpose.msra.mxu0 0
  %620 = vmatprep.subr.bf16.mxu0 0
  %621 = vmatpush1.bf16.xpose.msra.mxu0 0
  %622 = vmatprep.subr.bf16.mxu0 0
  %623 = vmatpush1.bf16.xpose.msra.mxu0 0
  %624 = vmatprep.subr.bf16.mxu0 0
  %625 = vmatpush1.bf16.xpose.msra.mxu0 0
  %626 = vmatprep.subr.bf16.mxu0 0
  %627 = vmatpush1.bf16.xpose.msra.mxu0 0
  %628 = vmatprep.subr.bf16.mxu0 0
  %629 = vmatpush1.bf16.xpose.msra.mxu0 0
  %630 = vmatprep.subr.bf16.mxu0 0
  %631 = vmatpush1.bf16.xpose.msra.mxu0 0
  %632 = vmatprep.subr.bf16.mxu0 0
  %633 = vmatpush1.bf16.xpose.msra.mxu0 0
  %634 = vmatprep.subr.bf16.mxu0 0
  %635 = vmatpush1.bf16.xpose.msra.mxu0 0
  %636 = vmatprep.subr.bf16.mxu0 0
  %637 = vmatpush1.bf16.xpose.msra.mxu0 0
  %638 = vmatprep.subr.bf16.mxu0 0
  %639 = vmatpush1.bf16.xpose.msra.mxu0 0
  %640 = vmatprep.subr.bf16.mxu0 0
  %641 = vmatpush1.bf16.xpose.msra.mxu0 0
  %642 = vmatprep.subr.bf16.mxu0 0
  %643 = vmatpush1.bf16.xpose.msra.mxu0 0
  %644 = vmatprep.mubr.bf16.mxu0 0
  %645 = vmatmul.mubr.bf16.gmra.mrb[0].mxu0 %v610
  %v646 = vpop.f32.mrb[0].mxu0
  %v647 = vadd.f32 %v475, %v646
  %v648 = vpop.f32.mrb[0].mxu0
  %v649 = vpop.f32.mrb[0].mxu0
  %v650 = vpop.f32.mrb[0].mxu0
  %651 = vdwg.mxu0
  %v652 = vsel %vm546, %v647, -inf
  %653 = vmax.xlane.f32.xlu0 %v652
  %v654 = vpop.xlane.xlu0 %653
  %v655 = vsub.f32 %v647, %v654
  %v656 = vmul.f32 %v655, 1.442695
  %v657 = vpow.pop %v656
  %v658 = vsel %vm546, %v657, 0.0
  %659 = vadd.xlane.f32.xlu0 %v658
  %v660 = vpop.xlane.xlu0 %659
  %v661 = vrcp.pop %v660
  %v662 = vmul.f32 %v657, %v661
  %v663 = vpack.c.bf16 %v662, %v662
  %v665 = vsel %vm546, %v663, 0
  %667 = vmatprep.subr.bf16.mxu0 0
  %668 = vmatpush1.bf16.msra.mxu0 %v564
  %669 = vmatprep.subr.bf16.mxu0 0
  %670 = vmatpush1.bf16.msra.mxu0 0
  %671 = vmatprep.subr.bf16.mxu0 0
  %672 = vmatpush1.bf16.msra.mxu0 0
  %673 = vmatprep.subr.bf16.mxu0 0
  %674 = vmatpush1.bf16.msra.mxu0 0
  %675 = vmatprep.subr.bf16.mxu0 0
  %676 = vmatpush1.bf16.msra.mxu0 0
  %677 = vmatprep.subr.bf16.mxu0 0
  %678 = vmatpush1.bf16.msra.mxu0 0
  %679 = vmatprep.subr.bf16.mxu0 0
  %680 = vmatpush1.bf16.msra.mxu0 0
  %681 = vmatprep.subr.bf16.mxu0 0
  %682 = vmatpush1.bf16.msra.mxu0 0
  %683 = vmatprep.subr.bf16.mxu0 0
  %684 = vmatpush1.bf16.msra.mxu0 0
  %685 = vmatprep.subr.bf16.mxu0 0
  %686 = vmatpush1.bf16.msra.mxu0 0
  %687 = vmatprep.subr.bf16.mxu0 0
  %688 = vmatpush1.bf16.msra.mxu0 0
  %689 = vmatprep.subr.bf16.mxu0 0
  %690 = vmatpush1.bf16.msra.mxu0 0
  %691 = vmatprep.subr.bf16.mxu0 0
  %692 = vmatpush1.bf16.msra.mxu0 0
  %693 = vmatprep.subr.bf16.mxu0 0
  %694 = vmatpush1.bf16.msra.mxu0 0
  %695 = vmatprep.subr.bf16.mxu0 0
  %696 = vmatpush1.bf16.msra.mxu0 0
  %697 = vmatprep.subr.bf16.mxu0 0
  %698 = vmatpush1.bf16.msra.mxu0 0
  %699 = vmatprep.mubr.bf16.mxu0 0
  %700 = vmatmul.mubr.bf16.gmra.mrb[0].mxu0 %v665
  %v701 = vpop.f32.mrb[0].mxu0
  %v702 = vadd.f32 0.0, %v701
  %v703 = vpop.f32.mrb[0].mxu0
  %v704 = vpop.f32.mrb[0].mxu0
  %v705 = vpop.f32.mrb[0].mxu0
  %706 = vdwg.mxu0
  %s707 = scalar_lea.vmem %s8, 4
  %v708 = vld [vmem:[%s707] sm:$0xf]
  %709 = vrot.lane.b32.xlu0 %v478, 48
  %v710 = vpop.permute.xlu0 %709
  %v712 = vsel %vm482, %v708, %v710
  %s713 = scalar_lea.vmem %s8, 20
  %v714 = vld [vmem:[%s713] sm:$0xf]
  %715 = vrot.lane.b32.xlu0 %v478, 16
  %v716 = vpop.permute.xlu0 %715
  %v718 = vsel %vm482, %v714, %v716
  %s719 = scalar_lea.vmem %s16, 16
  %720 = vst.msk [vmem:[%s719] sm:$0xff] %vm490, %v712
  %721 = vst.msk [vmem:[%s719 + $0x8] sm:$0xf] %vm492, %v710
  %s722 = scalar_lea.vmem %s16, 80
  %723 = vst.msk [vmem:[%s722] sm:$0xff] %vm490, %v718
  %724 = vst.msk [vmem:[%s722 + $0x8] sm:$0xf] %vm492, %v716
  %v725 = vpack.c.bf16 %v710, %v712
  %v726 = vpack.c.bf16 %v716, %v718
  %727 = vrot.lane.b32.xlu0 %v499, 96
  %v728 = vpop.permute.xlu0 %727
  %v730 = vsel %vm490, %v728, 0
  %v733 = vsel %vm490, %v725, 0
  %735 = vmatprep.subr.bf16.mxu0 0
  %736 = vmatpush1.bf16.xpose.msra.mxu0 %v733
  %737 = vmatprep.subr.bf16.mxu0 0
  %738 = vmatpush1.bf16.xpose.msra.mxu0 0
  %739 = vmatprep.subr.bf16.mxu0 0
  %740 = vmatpush1.bf16.xpose.msra.mxu0 0
  %741 = vmatprep.subr.bf16.mxu0 0
  %742 = vmatpush1.bf16.xpose.msra.mxu0 0
  %743 = vmatprep.subr.bf16.mxu0 0
  %744 = vmatpush1.bf16.xpose.msra.mxu0 0
  %745 = vmatprep.subr.bf16.mxu0 0
  %746 = vmatpush1.bf16.xpose.msra.mxu0 0
  %747 = vmatprep.subr.bf16.mxu0 0
  %748 = vmatpush1.bf16.xpose.msra.mxu0 0
  %749 = vmatprep.subr.bf16.mxu0 0
  %750 = vmatpush1.bf16.xpose.msra.mxu0 0
  %751 = vmatprep.subr.bf16.mxu0 0
  %752 = vmatpush1.bf16.xpose.msra.mxu0 0
  %753 = vmatprep.subr.bf16.mxu0 0
  %754 = vmatpush1.bf16.xpose.msra.mxu0 0
  %755 = vmatprep.subr.bf16.mxu0 0
  %756 = vmatpush1.bf16.xpose.msra.mxu0 0
  %757 = vmatprep.subr.bf16.mxu0 0
  %758 = vmatpush1.bf16.xpose.msra.mxu0 0
  %759 = vmatprep.subr.bf16.mxu0 0
  %760 = vmatpush1.bf16.xpose.msra.mxu0 0
  %761 = vmatprep.subr.bf16.mxu0 0
  %762 = vmatpush1.bf16.xpose.msra.mxu0 0
  %763 = vmatprep.subr.bf16.mxu0 0
  %764 = vmatpush1.bf16.xpose.msra.mxu0 0
  %765 = vmatprep.subr.bf16.mxu0 0
  %766 = vmatpush1.bf16.xpose.msra.mxu0 0
  %767 = vmatprep.mubr.bf16.mxu0 0
  %768 = vmatmul.mubr.bf16.gmra.mrb[0].mxu0 %v730
  %v769 = vpop.f32.mrb[0].mxu0
  %v770 = vadd.f32 %v475, %v769
  %v771 = vpop.f32.mrb[0].mxu0
  %v772 = vpop.f32.mrb[0].mxu0
  %v773 = vpop.f32.mrb[0].mxu0
  %774 = vdwg.mxu0
  %v775 = vsel %vm546, %v770, -inf
  %776 = vmax.xlane.f32.xlu0 %v775
  %v777 = vpop.xlane.xlu0 %776
  %v778 = vsub.f32 %v770, %v777
  %v779 = vmul.f32 %v778, 1.442695
  %v780 = vpow.pop %v779
  %v781 = vsel %vm546, %v780, 0.0
  %782 = vadd.xlane.f32.xlu0 %v781
  %v783 = vpop.xlane.xlu0 %782
  %v784 = vrcp.pop %v783
  %v785 = vmul.f32 %v780, %v784
  %v786 = vpack.c.bf16 %v785, %v785
  %v788 = vsel %vm546, %v786, 0
  %v791 = vsel %vm562, %v726, 0
  %793 = vmatprep.subr.bf16.mxu0 0
  %794 = vmatpush1.bf16.msra.mxu0 %v791
  %795 = vmatprep.subr.bf16.mxu0 0
  %796 = vmatpush1.bf16.msra.mxu0 0
  %797 = vmatprep.subr.bf16.mxu0 0
  %798 = vmatpush1.bf16.msra.mxu0 0
  %799 = vmatprep.subr.bf16.mxu0 0
  %800 = vmatpush1.bf16.msra.mxu0 0
  %801 = vmatprep.subr.bf16.mxu0 0
  %802 = vmatpush1.bf16.msra.mxu0 0
  %803 = vmatprep.subr.bf16.mxu0 0
  %804 = vmatpush1.bf16.msra.mxu0 0
  %805 = vmatprep.subr.bf16.mxu0 0
  %806 = vmatpush1.bf16.msra.mxu0 0
  %807 = vmatprep.subr.bf16.mxu0 0
  %808 = vmatpush1.bf16.msra.mxu0 0
  %809 = vmatprep.subr.bf16.mxu0 0
  %810 = vmatpush1.bf16.msra.mxu0 0
  %811 = vmatprep.subr.bf16.mxu0 0
  %812 = vmatpush1.bf16.msra.mxu0 0
  %813 = vmatprep.subr.bf16.mxu0 0
  %814 = vmatpush1.bf16.msra.mxu0 0
  %815 = vmatprep.subr.bf16.mxu0 0
  %816 = vmatpush1.bf16.msra.mxu0 0
  %817 = vmatprep.subr.bf16.mxu0 0
  %818 = vmatpush1.bf16.msra.mxu0 0
  %819 = vmatprep.subr.bf16.mxu0 0
  %820 = vmatpush1.bf16.msra.mxu0 0
  %821 = vmatprep.subr.bf16.mxu0 0
  %822 = vmatpush1.bf16.msra.mxu0 0
  %823 = vmatprep.subr.bf16.mxu0 0
  %824 = vmatpush1.bf16.msra.mxu0 0
  %825 = vmatprep.mubr.bf16.mxu0 0
  %826 = vmatmul.mubr.bf16.gmra.mrb[0].mxu0 %v788
  %v827 = vpop.f32.mrb[0].mxu0
  %v828 = vadd.f32 0.0, %v827
  %v829 = vpop.f32.mrb[0].mxu0
  %v830 = vpop.f32.mrb[0].mxu0
  %v831 = vpop.f32.mrb[0].mxu0
  %832 = vdwg.mxu0
  %833 = vrot.lane.b32.xlu0 %v499, 80
  %v834 = vpop.permute.xlu0 %833
  %v836 = vsel %vm490, %v834, 0
  %838 = vmatprep.subr.bf16.mxu0 0
  %839 = vmatpush1.bf16.xpose.msra.mxu0 %v733
  %840 = vmatprep.subr.bf16.mxu0 0
  %841 = vmatpush1.bf16.xpose.msra.mxu0 0
  %842 = vmatprep.subr.bf16.mxu0 0
  %843 = vmatpush1.bf16.xpose.msra.mxu0 0
  %844 = vmatprep.subr.bf16.mxu0 0
  %845 = vmatpush1.bf16.xpose.msra.mxu0 0
  %846 = vmatprep.subr.bf16.mxu0 0
  %847 = vmatpush1.bf16.xpose.msra.mxu0 0
  %848 = vmatprep.subr.bf16.mxu0 0
  %849 = vmatpush1.bf16.xpose.msra.mxu0 0
  %850 = vmatprep.subr.bf16.mxu0 0
  %851 = vmatpush1.bf16.xpose.msra.mxu0 0
  %852 = vmatprep.subr.bf16.mxu0 0
  %853 = vmatpush1.bf16.xpose.msra.mxu0 0
  %854 = vmatprep.subr.bf16.mxu0 0
  %855 = vmatpush1.bf16.xpose.msra.mxu0 0
  %856 = vmatprep.subr.bf16.mxu0 0
  %857 = vmatpush1.bf16.xpose.msra.mxu0 0
  %858 = vmatprep.subr.bf16.mxu0 0
  %859 = vmatpush1.bf16.xpose.msra.mxu0 0
  %860 = vmatprep.subr.bf16.mxu0 0
  %861 = vmatpush1.bf16.xpose.msra.mxu0 0
  %862 = vmatprep.subr.bf16.mxu0 0
  %863 = vmatpush1.bf16.xpose.msra.mxu0 0
  %864 = vmatprep.subr.bf16.mxu0 0
  %865 = vmatpush1.bf16.xpose.msra.mxu0 0
  %866 = vmatprep.subr.bf16.mxu0 0
  %867 = vmatpush1.bf16.xpose.msra.mxu0 0
  %868 = vmatprep.subr.bf16.mxu0 0
  %869 = vmatpush1.bf16.xpose.msra.mxu0 0
  %870 = vmatprep.mubr.bf16.mxu0 0
  %871 = vmatmul.mubr.bf16.gmra.mrb[0].mxu0 %v836
  %v872 = vpop.f32.mrb[0].mxu0
  %v873 = vadd.f32 %v475, %v872
  %v874 = vpop.f32.mrb[0].mxu0
  %v875 = vpop.f32.mrb[0].mxu0
  %v876 = vpop.f32.mrb[0].mxu0
  %877 = vdwg.mxu0
  %v878 = vsel %vm546, %v873, -inf
  %879 = vmax.xlane.f32.xlu0 %v878
  %v880 = vpop.xlane.xlu0 %879
  %v881 = vsub.f32 %v873, %v880
  %v882 = vmul.f32 %v881, 1.442695
  %v883 = vpow.pop %v882
  %v884 = vsel %vm546, %v883, 0.0
  %885 = vadd.xlane.f32.xlu0 %v884
  %v886 = vpop.xlane.xlu0 %885
  %v887 = vrcp.pop %v886
  %v888 = vmul.f32 %v883, %v887
  %v889 = vpack.c.bf16 %v888, %v888
  %v891 = vsel %vm546, %v889, 0
  %893 = vmatprep.subr.bf16.mxu0 0
  %894 = vmatpush1.bf16.msra.mxu0 %v791
  %895 = vmatprep.subr.bf16.mxu0 0
  %896 = vmatpush1.bf16.msra.mxu0 0
  %897 = vmatprep.subr.bf16.mxu0 0
  %898 = vmatpush1.bf16.msra.mxu0 0
  %899 = vmatprep.subr.bf16.mxu0 0
  %900 = vmatpush1.bf16.msra.mxu0 0
  %901 = vmatprep.subr.bf16.mxu0 0
  %902 = vmatpush1.bf16.msra.mxu0 0
  %903 = vmatprep.subr.bf16.mxu0 0
  %904 = vmatpush1.bf16.msra.mxu0 0
  %905 = vmatprep.subr.bf16.mxu0 0
  %906 = vmatpush1.bf16.msra.mxu0 0
  %907 = vmatprep.subr.bf16.mxu0 0
  %908 = vmatpush1.bf16.msra.mxu0 0
  %909 = vmatprep.subr.bf16.mxu0 0
  %910 = vmatpush1.bf16.msra.mxu0 0
  %911 = vmatprep.subr.bf16.mxu0 0
  %912 = vmatpush1.bf16.msra.mxu0 0
  %913 = vmatprep.subr.bf16.mxu0 0
  %914 = vmatpush1.bf16.msra.mxu0 0
  %915 = vmatprep.subr.bf16.mxu0 0
  %916 = vmatpush1.bf16.msra.mxu0 0
  %917 = vmatprep.subr.bf16.mxu0 0
  %918 = vmatpush1.bf16.msra.mxu0 0
  %919 = vmatprep.subr.bf16.mxu0 0
  %920 = vmatpush1.bf16.msra.mxu0 0
  %921 = vmatprep.subr.bf16.mxu0 0
  %922 = vmatpush1.bf16.msra.mxu0 0
  %923 = vmatprep.subr.bf16.mxu0 0
  %924 = vmatpush1.bf16.msra.mxu0 0
  %925 = vmatprep.mubr.bf16.mxu0 0
  %926 = vmatmul.mubr.bf16.gmra.mrb[0].mxu0 %v891
  %v927 = vpop.f32.mrb[0].mxu0
  %v928 = vadd.f32 0.0, %v927
  %v929 = vpop.f32.mrb[0].mxu0
  %v930 = vpop.f32.mrb[0].mxu0
  %v931 = vpop.f32.mrb[0].mxu0
  %932 = vdwg.mxu0
  %934 = vrot.lane.b32.xlu0 %v702, 16
  %v935 = vpop.permute.xlu0 %934
  %938 = vrot.lane.b32.xlu0 %v828, 32
  %v939 = vpop.permute.xlu0 %938
  %942 = vrot.lane.b32.xlu0 %v928, 48
  %v943 = vpop.permute.xlu0 %942
  %v945 = vsel %vm490, %v601, %v935
  %vm946 = vcmask 261120
  %v947 = vsel %vm946, %v945, %v939
  %vm948 = vcmask 392192
  %v949 = vsel %vm948, %v947, %v943
  %s950 = scalar_lea.vmem %s9, 8
  %v951 = vld [vmem:[%s950] sm:$0xff]
  %s952 = scalar_lea.vmem %s8, 8
  %v953 = vld [vmem:[%s952] sm:$0xf]
  %v955 = vrot.slane %v474, 4
  %956 = vrot.lane.b32.xlu0 %v955, 64
  %v957 = vpop.permute.xlu0 %956
  %v959 = vsel %vm482, %v953, %v957
  %s960 = scalar_lea.vmem %s8, 24
  %v961 = vld [vmem:[%s960] sm:$0xf]
  %962 = vrot.lane.b32.xlu0 %v955, 32
  %v963 = vpop.permute.xlu0 %962
  %v965 = vsel %vm482, %v961, %v963
  %s966 = scalar_lea.vmem %s16, 32
  %967 = vst.msk [vmem:[%s966] sm:$0xff] %vm490, %v959
  %968 = vst.msk [vmem:[%s966 + $0x8] sm:$0xf] %vm492, %v957
  %s969 = scalar_lea.vmem %s16, 96
  %970 = vst.msk [vmem:[%s969] sm:$0xff] %vm490, %v965
  %971 = vst.msk [vmem:[%s969 + $0x8] sm:$0xf] %vm492, %v963
  %v972 = vpack.c.bf16 %v957, %v959
  %v973 = vpack.c.bf16 %v963, %v965
  %v974 = vpack.c.bf16 %v474, %v474
  %v976 = vsel %vm490, %v974, 0
  %v979 = vsel %vm490, %v972, 0
  %981 = vmatprep.subr.bf16.mxu0 0
  %982 = vmatpush1.bf16.xpose.msra.mxu0 %v979
  %983 = vmatprep.subr.bf16.mxu0 0
  %984 = vmatpush1.bf16.xpose.msra.mxu0 0
  %985 = vmatprep.subr.bf16.mxu0 0
  %986 = vmatpush1.bf16.xpose.msra.mxu0 0
  %987 = vmatprep.subr.bf16.mxu0 0
  %988 = vmatpush1.bf16.xpose.msra.mxu0 0
  %989 = vmatprep.subr.bf16.mxu0 0
  %990 = vmatpush1.bf16.xpose.msra.mxu0 0
  %991 = vmatprep.subr.bf16.mxu0 0
  %992 = vmatpush1.bf16.xpose.msra.mxu0 0
  %993 = vmatprep.subr.bf16.mxu0 0
  %994 = vmatpush1.bf16.xpose.msra.mxu0 0
  %995 = vmatprep.subr.bf16.mxu0 0
  %996 = vmatpush1.bf16.xpose.msra.mxu0 0
  %997 = vmatprep.subr.bf16.mxu0 0
  %998 = vmatpush1.bf16.xpose.msra.mxu0 0
  %999 = vmatprep.subr.bf16.mxu0 0
  %1000 = vmatpush1.bf16.xpose.msra.mxu0 0
  %1001 = vmatprep.subr.bf16.mxu0 0
  %1002 = vmatpush1.bf16.xpose.msra.mxu0 0
  %1003 = vmatprep.subr.bf16.mxu0 0
  %1004 = vmatpush1.bf16.xpose.msra.mxu0 0
  %1005 = vmatprep.subr.bf16.mxu0 0
  %1006 = vmatpush1.bf16.xpose.msra.mxu0 0
  %1007 = vmatprep.subr.bf16.mxu0 0
  %1008 = vmatpush1.bf16.xpose.msra.mxu0 0
  %1009 = vmatprep.subr.bf16.mxu0 0
  %1010 = vmatpush1.bf16.xpose.msra.mxu0 0
  %1011 = vmatprep.subr.bf16.mxu0 0
  %1012 = vmatpush1.bf16.xpose.msra.mxu0 0
  %1013 = vmatprep.mubr.bf16.mxu0 0
  %1014 = vmatmul.mubr.bf16.gmra.mrb[0].mxu0 %v976
  %v1015 = vpop.f32.mrb[0].mxu0
  %v1016 = vadd.f32 %v951, %v1015
  %v1017 = vpop.f32.mrb[0].mxu0
  %v1018 = vpop.f32.mrb[0].mxu0
  %v1019 = vpop.f32.mrb[0].mxu0
  %1020 = vdwg.mxu0
  %v1021 = vsel %vm546, %v1016, -inf
  %1022 = vmax.xlane.f32.xlu0 %v1021
  %v1023 = vpop.xlane.xlu0 %1022
  %v1024 = vsub.f32 %v1016, %v1023
  %v1025 = vmul.f32 %v1024, 1.442695
  %v1026 = vpow.pop %v1025
  %v1027 = vsel %vm546, %v1026, 0.0
  %1028 = vadd.xlane.f32.xlu0 %v1027
  %v1029 = vpop.xlane.xlu0 %1028
  %v1030 = vrcp.pop %v1029
  %v1031 = vmul.f32 %v1026, %v1030
  %v1032 = vpack.c.bf16 %v1031, %v1031
  %v1034 = vsel %vm546, %v1032, 0
  %v1037 = vsel %vm562, %v973, 0
  %1039 = vmatprep.subr.bf16.mxu0 0
  %1040 = vmatpush1.bf16.msra.mxu0 %v1037
  %1041 = vmatprep.subr.bf16.mxu0 0
  %1042 = vmatpush1.bf16.msra.mxu0 0
  %1043 = vmatprep.subr.bf16.mxu0 0
  %1044 = vmatpush1.bf16.msra.mxu0 0
  %1045 = vmatprep.subr.bf16.mxu0 0
  %1046 = vmatpush1.bf16.msra.mxu0 0
  %1047 = vmatprep.subr.bf16.mxu0 0
  %1048 = vmatpush1.bf16.msra.mxu0 0
  %1049 = vmatprep.subr.bf16.mxu0 0
  %1050 = vmatpush1.bf16.msra.mxu0 0
  %1051 = vmatprep.subr.bf16.mxu0 0
  %1052 = vmatpush1.bf16.msra.mxu0 0
  %1053 = vmatprep.subr.bf16.mxu0 0
  %1054 = vmatpush1.bf16.msra.mxu0 0
  %1055 = vmatprep.subr.bf16.mxu0 0
  %1056 = vmatpush1.bf16.msra.mxu0 0
  %1057 = vmatprep.subr.bf16.mxu0 0
  %1058 = vmatpush1.bf16.msra.mxu0 0
  %1059 = vmatprep.subr.bf16.mxu0 0
  %1060 = vmatpush1.bf16.msra.mxu0 0
  %1061 = vmatprep.subr.bf16.mxu0 0
  %1062 = vmatpush1.bf16.msra.mxu0 0
  %1063 = vmatprep.subr.bf16.mxu0 0
  %1064 = vmatpush1.bf16.msra.mxu0 0
  %1065 = vmatprep.subr.bf16.mxu0 0
  %1066 = vmatpush1.bf16.msra.mxu0 0
  %1067 = vmatprep.subr.bf16.mxu0 0
  %1068 = vmatpush1.bf16.msra.mxu0 0
  %1069 = vmatprep.subr.bf16.mxu0 0
  %1070 = vmatpush1.bf16.msra.mxu0 0
  %1071 = vmatprep.mubr.bf16.mxu0 0
  %1072 = vmatmul.mubr.bf16.gmra.mrb[0].mxu0 %v1034
  %v1073 = vpop.f32.mrb[0].mxu0
  %v1074 = vadd.f32 0.0, %v1073
  %v1075 = vpop.f32.mrb[0].mxu0
  %v1076 = vpop.f32.mrb[0].mxu0
  %v1077 = vpop.f32.mrb[0].mxu0
  %1078 = vdwg.mxu0
  %1080 = vrot.lane.b32.xlu0 %v974, 112
  %v1081 = vpop.permute.xlu0 %1080
  %v1083 = vsel %vm490, %v1081, 0
  %1085 = vmatprep.subr.bf16.mxu0 0
  %1086 = vmatpush1.bf16.xpose.msra.mxu0 %v979
  %1087 = vmatprep.subr.bf16.mxu0 0
  %1088 = vmatpush1.bf16.xpose.msra.mxu0 0
  %1089 = vmatprep.subr.bf16.mxu0 0
  %1090 = vmatpush1.bf16.xpose.msra.mxu0 0
  %1091 = vmatprep.subr.bf16.mxu0 0
  %1092 = vmatpush1.bf16.xpose.msra.mxu0 0
  %1093 = vmatprep.subr.bf16.mxu0 0
  %1094 = vmatpush1.bf16.xpose.msra.mxu0 0
  %1095 = vmatprep.subr.bf16.mxu0 0
  %1096 = vmatpush1.bf16.xpose.msra.mxu0 0
  %1097 = vmatprep.subr.bf16.mxu0 0
  %1098 = vmatpush1.bf16.xpose.msra.mxu0 0
  %1099 = vmatprep.subr.bf16.mxu0 0
  %1100 = vmatpush1.bf16.xpose.msra.mxu0 0
  %1101 = vmatprep.subr.bf16.mxu0 0
  %1102 = vmatpush1.bf16.xpose.msra.mxu0 0
  %1103 = vmatprep.subr.bf16.mxu0 0
  %1104 = vmatpush1.bf16.xpose.msra.mxu0 0
  %1105 = vmatprep.subr.bf16.mxu0 0
  %1106 = vmatpush1.bf16.xpose.msra.mxu0 0
  %1107 = vmatprep.subr.bf16.mxu0 0
  %1108 = vmatpush1.bf16.xpose.msra.mxu0 0
  %1109 = vmatprep.subr.bf16.mxu0 0
  %1110 = vmatpush1.bf16.xpose.msra.mxu0 0
  %1111 = vmatprep.subr.bf16.mxu0 0
  %1112 = vmatpush1.bf16.xpose.msra.mxu0 0
  %1113 = vmatprep.subr.bf16.mxu0 0
  %1114 = vmatpush1.bf16.xpose.msra.mxu0 0
  %1115 = vmatprep.subr.bf16.mxu0 0
  %1116 = vmatpush1.bf16.xpose.msra.mxu0 0
  %1117 = vmatprep.mubr.bf16.mxu0 0
  %1118 = vmatmul.mubr.bf16.gmra.mrb[0].mxu0 %v1083
  %v1119 = vpop.f32.mrb[0].mxu0
  %v1120 = vadd.f32 %v951, %v1119
  %v1121 = vpop.f32.mrb[0].mxu0
  %v1122 = vpop.f32.mrb[0].mxu0
  %v1123 = vpop.f32.mrb[0].mxu0
  %1124 = vdwg.mxu0
  %v1125 = vsel %vm546, %v1120, -inf
  %1126 = vmax.xlane.f32.xlu0 %v1125
  %v1127 = vpop.xlane.xlu0 %1126
  %v1128 = vsub.f32 %v1120, %v1127
  %v1129 = vmul.f32 %v1128, 1.442695
  %v1130 = vpow.pop %v1129
  %v1131 = vsel %vm546, %v1130, 0.0
  %1132 = vadd.xlane.f32.xlu0 %v1131
  %v1133 = vpop.xlane.xlu0 %1132
  %v1134 = vrcp.pop %v1133
  %v1135 = vmul.f32 %v1130, %v1134
  %v1136 = vpack.c.bf16 %v1135, %v1135
  %v1138 = vsel %vm546, %v1136, 0
  %1140 = vmatprep.subr.bf16.mxu0 0
  %1141 = vmatpush1.bf16.msra.mxu0 %v1037
  %1142 = vmatprep.subr.bf16.mxu0 0
  %1143 = vmatpush1.bf16.msra.mxu0 0
  %1144 = vmatprep.subr.bf16.mxu0 0
  %1145 = vmatpush1.bf16.msra.mxu0 0
  %1146 = vmatprep.subr.bf16.mxu0 0
  %1147 = vmatpush1.bf16.msra.mxu0 0
  %1148 = vmatprep.subr.bf16.mxu0 0
  %1149 = vmatpush1.bf16.msra.mxu0 0
  %1150 = vmatprep.subr.bf16.mxu0 0
  %1151 = vmatpush1.bf16.msra.mxu0 0
  %1152 = vmatprep.subr.bf16.mxu0 0
  %1153 = vmatpush1.bf16.msra.mxu0 0
  %1154 = vmatprep.subr.bf16.mxu0 0
  %1155 = vmatpush1.bf16.msra.mxu0 0
  %1156 = vmatprep.subr.bf16.mxu0 0
  %1157 = vmatpush1.bf16.msra.mxu0 0
  %1158 = vmatprep.subr.bf16.mxu0 0
  %1159 = vmatpush1.bf16.msra.mxu0 0
  %1160 = vmatprep.subr.bf16.mxu0 0
  %1161 = vmatpush1.bf16.msra.mxu0 0
  %1162 = vmatprep.subr.bf16.mxu0 0
  %1163 = vmatpush1.bf16.msra.mxu0 0
  %1164 = vmatprep.subr.bf16.mxu0 0
  %1165 = vmatpush1.bf16.msra.mxu0 0
  %1166 = vmatprep.subr.bf16.mxu0 0
  %1167 = vmatpush1.bf16.msra.mxu0 0
  %1168 = vmatprep.subr.bf16.mxu0 0
  %1169 = vmatpush1.bf16.msra.mxu0 0
  %1170 = vmatprep.subr.bf16.mxu0 0
  %1171 = vmatpush1.bf16.msra.mxu0 0
  %1172 = vmatprep.mubr.bf16.mxu0 0
  %1173 = vmatmul.mubr.bf16.gmra.mrb[0].mxu0 %v1138
  %v1174 = vpop.f32.mrb[0].mxu0
  %v1175 = vadd.f32 0.0, %v1174
  %v1176 = vpop.f32.mrb[0].mxu0
  %v1177 = vpop.f32.mrb[0].mxu0
  %v1178 = vpop.f32.mrb[0].mxu0
  %1179 = vdwg.mxu0
  %s1180 = scalar_lea.vmem %s8, 12
  %v1181 = vld [vmem:[%s1180] sm:$0xf]
  %1182 = vrot.lane.b32.xlu0 %v955, 48
  %v1183 = vpop.permute.xlu0 %1182
  %v1185 = vsel %vm482, %v1181, %v1183
  %s1186 = scalar_lea.vmem %s8, 28
  %v1187 = vld [vmem:[%s1186] sm:$0xf]
  %1188 = vrot.lane.b32.xlu0 %v955, 16
  %v1189 = vpop.permute.xlu0 %1188
  %v1191 = vsel %vm482, %v1187, %v1189
  %s1192 = scalar_lea.vmem %s16, 48
  %1193 = vst.msk [vmem:[%s1192] sm:$0xff] %vm490, %v1185
  %1194 = vst.msk [vmem:[%s1192 + $0x8] sm:$0xf] %vm492, %v1183
  %s1195 = scalar_lea.vmem %s16, 112
  %1196 = vst.msk [vmem:[%s1195] sm:$0xff] %vm490, %v1191
  %1197 = vst.msk [vmem:[%s1195 + $0x8] sm:$0xf] %vm492, %v1189
  %v1198 = vpack.c.bf16 %v1183, %v1185
  %v1199 = vpack.c.bf16 %v1189, %v1191
  %1200 = vrot.lane.b32.xlu0 %v974, 96
  %v1201 = vpop.permute.xlu0 %1200
  %v1203 = vsel %vm490, %v1201, 0
  %v1206 = vsel %vm490, %v1198, 0
  %1208 = vmatprep.subr.bf16.mxu0 0
  %1209 = vmatpush1.bf16.xpose.msra.mxu0 %v1206
  %1210 = vmatprep.subr.bf16.mxu0 0
  %1211 = vmatpush1.bf16.xpose.msra.mxu0 0
  %1212 = vmatprep.subr.bf16.mxu0 0
  %1213 = vmatpush1.bf16.xpose.msra.mxu0 0
  %1214 = vmatprep.subr.bf16.mxu0 0
  %1215 = vmatpush1.bf16.xpose.msra.mxu0 0
  %1216 = vmatprep.subr.bf16.mxu0 0
  %1217 = vmatpush1.bf16.xpose.msra.mxu0 0
  %1218 = vmatprep.subr.bf16.mxu0 0
  %1219 = vmatpush1.bf16.xpose.msra.mxu0 0
  %1220 = vmatprep.subr.bf16.mxu0 0
  %1221 = vmatpush1.bf16.xpose.msra.mxu0 0
  %1222 = vmatprep.subr.bf16.mxu0 0
  %1223 = vmatpush1.bf16.xpose.msra.mxu0 0
  %1224 = vmatprep.subr.bf16.mxu0 0
  %1225 = vmatpush1.bf16.xpose.msra.mxu0 0
  %1226 = vmatprep.subr.bf16.mxu0 0
  %1227 = vmatpush1.bf16.xpose.msra.mxu0 0
  %1228 = vmatprep.subr.bf16.mxu0 0
  %1229 = vmatpush1.bf16.xpose.msra.mxu0 0
  %1230 = vmatprep.subr.bf16.mxu0 0
  %1231 = vmatpush1.bf16.xpose.msra.mxu0 0
  %1232 = vmatprep.subr.bf16.mxu0 0
  %1233 = vmatpush1.bf16.xpose.msra.mxu0 0
  %1234 = vmatprep.subr.bf16.mxu0 0
  %1235 = vmatpush1.bf16.xpose.msra.mxu0 0
  %1236 = vmatprep.subr.bf16.mxu0 0
  %1237 = vmatpush1.bf16.xpose.msra.mxu0 0
  %1238 = vmatprep.subr.bf16.mxu0 0
  %1239 = vmatpush1.bf16.xpose.msra.mxu0 0
  %1240 = vmatprep.mubr.bf16.mxu0 0
  %1241 = vmatmul.mubr.bf16.gmra.mrb[0].mxu0 %v1203
  %v1242 = vpop.f32.mrb[0].mxu0
  %v1243 = vadd.f32 %v951, %v1242
  %v1244 = vpop.f32.mrb[0].mxu0
  %v1245 = vpop.f32.mrb[0].mxu0
  %v1246 = vpop.f32.mrb[0].mxu0
  %1247 = vdwg.mxu0
  %v1248 = vsel %vm546, %v1243, -inf
  %1249 = vmax.xlane.f32.xlu0 %v1248
  %v1250 = vpop.xlane.xlu0 %1249
  %v1251 = vsub.f32 %v1243, %v1250
  %v1252 = vmul.f32 %v1251, 1.442695
  %v1253 = vpow.pop %v1252
  %v1254 = vsel %vm546, %v1253, 0.0
  %1255 = vadd.xlane.f32.xlu0 %v1254
  %v1256 = vpop.xlane.xlu0 %1255
  %v1257 = vrcp.pop %v1256
  %v1258 = vmul.f32 %v1253, %v1257
  %v1259 = vpack.c.bf16 %v1258, %v1258
  %v1261 = vsel %vm546, %v1259, 0
  %v1264 = vsel %vm562, %v1199, 0
  %1266 = vmatprep.subr.bf16.mxu0 0
  %1267 = vmatpush1.bf16.msra.mxu0 %v1264
  %1268 = vmatprep.subr.bf16.mxu0 0
  %1269 = vmatpush1.bf16.msra.mxu0 0
  %1270 = vmatprep.subr.bf16.mxu0 0
  %1271 = vmatpush1.bf16.msra.mxu0 0
  %1272 = vmatprep.subr.bf16.mxu0 0
  %1273 = vmatpush1.bf16.msra.mxu0 0
  %1274 = vmatprep.subr.bf16.mxu0 0
  %1275 = vmatpush1.bf16.msra.mxu0 0
  %1276 = vmatprep.subr.bf16.mxu0 0
  %1277 = vmatpush1.bf16.msra.mxu0 0
  %1278 = vmatprep.subr.bf16.mxu0 0
  %1279 = vmatpush1.bf16.msra.mxu0 0
  %1280 = vmatprep.subr.bf16.mxu0 0
  %1281 = vmatpush1.bf16.msra.mxu0 0
  %1282 = vmatprep.subr.bf16.mxu0 0
  %1283 = vmatpush1.bf16.msra.mxu0 0
  %1284 = vmatprep.subr.bf16.mxu0 0
  %1285 = vmatpush1.bf16.msra.mxu0 0
  %1286 = vmatprep.subr.bf16.mxu0 0
  %1287 = vmatpush1.bf16.msra.mxu0 0
  %1288 = vmatprep.subr.bf16.mxu0 0
  %1289 = vmatpush1.bf16.msra.mxu0 0
  %1290 = vmatprep.subr.bf16.mxu0 0
  %1291 = vmatpush1.bf16.msra.mxu0 0
  %1292 = vmatprep.subr.bf16.mxu0 0
  %1293 = vmatpush1.bf16.msra.mxu0 0
  %1294 = vmatprep.subr.bf16.mxu0 0
  %1295 = vmatpush1.bf16.msra.mxu0 0
  %1296 = vmatprep.subr.bf16.mxu0 0
  %1297 = vmatpush1.bf16.msra.mxu0 0
  %1298 = vmatprep.mubr.bf16.mxu0 0
  %1299 = vmatmul.mubr.bf16.gmra.mrb[0].mxu0 %v1261
  %v1300 = vpop.f32.mrb[0].mxu0
  %v1301 = vadd.f32 0.0, %v1300
  %v1302 = vpop.f32.mrb[0].mxu0
  %v1303 = vpop.f32.mrb[0].mxu0
  %v1304 = vpop.f32.mrb[0].mxu0
  %1305 = vdwg.mxu0
  %1306 = vrot.lane.b32.xlu0 %v974, 80
  %v1307 = vpop.permute.xlu0 %1306
  %v1309 = vsel %vm490, %v1307, 0
  %1311 = vmatprep.subr.bf16.mxu0 0
  %1312 = vmatpush1.bf16.xpose.msra.mxu0 %v1206
  %1313 = vmatprep.subr.bf16.mxu0 0
  %1314 = vmatpush1.bf16.xpose.msra.mxu0 0
  %1315 = vmatprep.subr.bf16.mxu0 0
  %1316 = vmatpush1.bf16.xpose.msra.mxu0 0
  %1317 = vmatprep.subr.bf16.mxu0 0
  %1318 = vmatpush1.bf16.xpose.msra.mxu0 0
  %1319 = vmatprep.subr.bf16.mxu0 0
  %1320 = vmatpush1.bf16.xpose.msra.mxu0 0
  %1321 = vmatprep.subr.bf16.mxu0 0
  %1322 = vmatpush1.bf16.xpose.msra.mxu0 0
  %1323 = vmatprep.subr.bf16.mxu0 0
  %1324 = vmatpush1.bf16.xpose.msra.mxu0 0
  %1325 = vmatprep.subr.bf16.mxu0 0
  %1326 = vmatpush1.bf16.xpose.msra.mxu0 0
  %1327 = vmatprep.subr.bf16.mxu0 0
  %1328 = vmatpush1.bf16.xpose.msra.mxu0 0
  %1329 = vmatprep.subr.bf16.mxu0 0
  %1330 = vmatpush1.bf16.xpose.msra.mxu0 0
  %1331 = vmatprep.subr.bf16.mxu0 0
  %1332 = vmatpush1.bf16.xpose.msra.mxu0 0
  %1333 = vmatprep.subr.bf16.mxu0 0
  %1334 = vmatpush1.bf16.xpose.msra.mxu0 0
  %1335 = vmatprep.subr.bf16.mxu0 0
  %1336 = vmatpush1.bf16.xpose.msra.mxu0 0
  %1337 = vmatprep.subr.bf16.mxu0 0
  %1338 = vmatpush1.bf16.xpose.msra.mxu0 0
  %1339 = vmatprep.subr.bf16.mxu0 0
  %1340 = vmatpush1.bf16.xpose.msra.mxu0 0
  %1341 = vmatprep.subr.bf16.mxu0 0
  %1342 = vmatpush1.bf16.xpose.msra.mxu0 0
  %1343 = vmatprep.mubr.bf16.mxu0 0
  %1344 = vmatmul.mubr.bf16.gmra.mrb[0].mxu0 %v1309
  %v1345 = vpop.f32.mrb[0].mxu0
  %v1346 = vadd.f32 %v951, %v1345
  %v1347 = vpop.f32.mrb[0].mxu0
  %v1348 = vpop.f32.mrb[0].mxu0
  %v1349 = vpop.f32.mrb[0].mxu0
  %1350 = vdwg.mxu0
  %v1351 = vsel %vm546, %v1346, -inf
  %1352 = vmax.xlane.f32.xlu0 %v1351
  %v1353 = vpop.xlane.xlu0 %1352
  %v1354 = vsub.f32 %v1346, %v1353
  %v1355 = vmul.f32 %v1354, 1.442695
  %v1356 = vpow.pop %v1355
  %v1357 = vsel %vm546, %v1356, 0.0
  %1358 = vadd.xlane.f32.xlu0 %v1357
  %v1359 = vpop.xlane.xlu0 %1358
  %v1360 = vrcp.pop %v1359
  %v1361 = vmul.f32 %v1356, %v1360
  %v1362 = vpack.c.bf16 %v1361, %v1361
  %v1364 = vsel %vm546, %v1362, 0
  %1366 = vmatprep.subr.bf16.mxu0 0
  %1367 = vmatpush1.bf16.msra.mxu0 %v1264
  %1368 = vmatprep.subr.bf16.mxu0 0
  %1369 = vmatpush1.bf16.msra.mxu0 0
  %1370 = vmatprep.subr.bf16.mxu0 0
  %1371 = vmatpush1.bf16.msra.mxu0 0
  %1372 = vmatprep.subr.bf16.mxu0 0
  %1373 = vmatpush1.bf16.msra.mxu0 0
  %1374 = vmatprep.subr.bf16.mxu0 0
  %1375 = vmatpush1.bf16.msra.mxu0 0
  %1376 = vmatprep.subr.bf16.mxu0 0
  %1377 = vmatpush1.bf16.msra.mxu0 0
  %1378 = vmatprep.subr.bf16.mxu0 0
  %1379 = vmatpush1.bf16.msra.mxu0 0
  %1380 = vmatprep.subr.bf16.mxu0 0
  %1381 = vmatpush1.bf16.msra.mxu0 0
  %1382 = vmatprep.subr.bf16.mxu0 0
  %1383 = vmatpush1.bf16.msra.mxu0 0
  %1384 = vmatprep.subr.bf16.mxu0 0
  %1385 = vmatpush1.bf16.msra.mxu0 0
  %1386 = vmatprep.subr.bf16.mxu0 0
  %1387 = vmatpush1.bf16.msra.mxu0 0
  %1388 = vmatprep.subr.bf16.mxu0 0
  %1389 = vmatpush1.bf16.msra.mxu0 0
  %1390 = vmatprep.subr.bf16.mxu0 0
  %1391 = vmatpush1.bf16.msra.mxu0 0
  %1392 = vmatprep.subr.bf16.mxu0 0
  %1393 = vmatpush1.bf16.msra.mxu0 0
  %1394 = vmatprep.subr.bf16.mxu0 0
  %1395 = vmatpush1.bf16.msra.mxu0 0
  %1396 = vmatprep.subr.bf16.mxu0 0
  %1397 = vmatpush1.bf16.msra.mxu0 0
  %1398 = vmatprep.mubr.bf16.mxu0 0
  %1399 = vmatmul.mubr.bf16.gmra.mrb[0].mxu0 %v1364
  %v1400 = vpop.f32.mrb[0].mxu0
  %v1401 = vadd.f32 0.0, %v1400
  %v1402 = vpop.f32.mrb[0].mxu0
  %v1403 = vpop.f32.mrb[0].mxu0
  %v1404 = vpop.f32.mrb[0].mxu0
  %1405 = vdwg.mxu0
  %1407 = vrot.lane.b32.xlu0 %v1175, 16
  %v1408 = vpop.permute.xlu0 %1407
  %1411 = vrot.lane.b32.xlu0 %v1301, 32
  %v1412 = vpop.permute.xlu0 %1411
  %1415 = vrot.lane.b32.xlu0 %v1401, 48
  %v1416 = vpop.permute.xlu0 %1415
  %v1418 = vsel %vm490, %v1074, %v1408
  %v1419 = vsel %vm946, %v1418, %v1412
  %v1420 = vsel %vm948, %v1419, %v1416
  %v1421 = vpack.c.bf16 %v1420, %v949
  %v1422 = vld [vmem:[%s10] sm:$0xf]
  %v1423 = vld [vmem:[%s10 + $0x4] sm:$0xf]
  %v1424 = vld [vmem:[%s10 + $0x8] sm:$0xf]
  %v1425 = vld [vmem:[%s10 + $0xc] sm:$0xf]
  %v1426 = vld [vmem:[%s10 + $0x10] sm:$0xf]
  %v1427 = vld [vmem:[%s10 + $0x14] sm:$0xf]
  %v1428 = vld [vmem:[%s10 + $0x18] sm:$0xf]
  %v1429 = vld [vmem:[%s10 + $0x1c] sm:$0xf]
  %v1438 = vunpack.c.l.b16 %v1422
  %v1439 = vunpack.c.l.b16 %v1423
  %v1440 = vunpack.c.l.b16 %v1424
  %v1441 = vunpack.c.l.b16 %v1425
  %v1442 = vunpack.c.l.b16 %v1426
  %v1443 = vunpack.c.l.b16 %v1427
  %v1444 = vunpack.c.l.b16 %v1428
  %v1445 = vunpack.c.l.b16 %v1429
  %v1446 = vpack.c.b16 %v1439, %v1438
  %v1447 = vpack.c.b16 %v1441, %v1440
  %v1448 = vpack.c.b16 %v1443, %v1442
  %v1449 = vpack.c.b16 %v1445, %v1444
  %v1455 = vsel %vm265, %v1421, 0
  %1457 = vmatprep.subr.bf16.mxu0 0
  %1458 = vmatpush1.bf16.msra.mxu0 %v1446
  %1459 = vmatprep.subr.bf16.mxu0 0
  %1460 = vmatpush1.bf16.msra.mxu0 %v1447
  %1461 = vmatprep.subr.bf16.mxu0 0
  %1462 = vmatpush1.bf16.msra.mxu0 %v1448
  %1463 = vmatprep.subr.bf16.mxu0 0
  %1464 = vmatpush1.bf16.msra.mxu0 %v1449
  %1465 = vmatprep.subr.bf16.mxu0 0
  %1466 = vmatpush1.bf16.msra.mxu0 0
  %1467 = vmatprep.subr.bf16.mxu0 0
  %1468 = vmatpush1.bf16.msra.mxu0 0
  %1469 = vmatprep.subr.bf16.mxu0 0
  %1470 = vmatpush1.bf16.msra.mxu0 0
  %1471 = vmatprep.subr.bf16.mxu0 0
  %1472 = vmatpush1.bf16.msra.mxu0 0
  %1473 = vmatprep.subr.bf16.mxu0 0
  %1474 = vmatpush1.bf16.msra.mxu0 0
  %1475 = vmatprep.subr.bf16.mxu0 0
  %1476 = vmatpush1.bf16.msra.mxu0 0
  %1477 = vmatprep.subr.bf16.mxu0 0
  %1478 = vmatpush1.bf16.msra.mxu0 0
  %1479 = vmatprep.subr.bf16.mxu0 0
  %1480 = vmatpush1.bf16.msra.mxu0 0
  %1481 = vmatprep.subr.bf16.mxu0 0
  %1482 = vmatpush1.bf16.msra.mxu0 0
  %1483 = vmatprep.subr.bf16.mxu0 0
  %1484 = vmatpush1.bf16.msra.mxu0 0
  %1485 = vmatprep.subr.bf16.mxu0 0
  %1486 = vmatpush1.bf16.msra.mxu0 0
  %1487 = vmatprep.subr.bf16.mxu0 0
  %1488 = vmatpush1.bf16.msra.mxu0 0
  %1489 = vmatprep.mubr.bf16.mxu0 0
  %1490 = vmatmul.mubr.bf16.gmra.mrb[0].mxu0 %v1455
  %v1491 = vpop.f32.mrb[0].mxu0
  %v1492 = vadd.f32 0.0, %v1491
  %v1493 = vpop.f32.mrb[0].mxu0
  %v1494 = vpop.f32.mrb[0].mxu0
  %v1495 = vadd.f32 0.0, %v1494
  %v1496 = vpop.f32.mrb[0].mxu0
  %1497 = vdwg.mxu0
  %v1498 = vadd.f32 %v157, %v1492
  %v1499 = vadd.f32 %v260, %v1495
  %v1500 = vmul.f32 %v1498, %v1498
  %v1501 = vmul.f32 %v1499, %v1499
  %v1502 = vsel %vm265, %v1500, 0.0
  %1503 = vadd.xlane.f32.xlu0 %v1502
  %v1504 = vpop.xlane.xlu0 %1503
  %v1505 = vsel %vm265, %v1501, 0.0
  %1506 = vadd.xlane.f32.xlu0 %v1505
  %v1507 = vpop.xlane.xlu0 %1506
  %v1508 = vmul.f32 %v1504, %v272
  %v1509 = vmul.f32 %v1507, %v272
  %v1510 = vadd.f32 %v1508, 1e-06
  %v1511 = vadd.f32 %v1509, 1e-06
  %v1512 = vrsqrt.pop %v1510
  %v1513 = vrsqrt.pop %v1511
  %v1514 = vmul.f32 %v1498, %v1512
  %v1515 = vmul.f32 %v1499, %v1513
  %v1516 = vld [vmem:[%s11] sm:$0x1]
  %v1518 = vlaneseq
  %v1519 = vshrl.u32 %v1518, 7
  %v1520 = vsub.s32 0, %v1519
  %v1521 = vrot.slane %v1516, %v1520
  %v1523 = vmul.f32 %v1514, %v1521
  %v1524 = vmul.f32 %v1515, %v1521
  %v1525 = vpack.c.bf16 %v1524, %v1523
  %v1526 = vld [vmem:[%s12] sm:$0xff]
  %v1527 = vld [vmem:[%s12 + $0x8] sm:$0xff]
  %v1528 = vld [vmem:[%s12 + $0x10] sm:$0xff]
  %v1529 = vld [vmem:[%s12 + $0x18] sm:$0xff]
  %v1530 = vld [vmem:[%s12 + $0x20] sm:$0xff]
  %v1531 = vld [vmem:[%s12 + $0x28] sm:$0xff]
  %v1532 = vld [vmem:[%s12 + $0x30] sm:$0xff]
  %v1533 = vld [vmem:[%s12 + $0x38] sm:$0xff]
  %v1542 = vunpack.c.l.b16 %v1526
  %v1543 = vunpack.c.h.b16 %v1526
  %v1544 = vunpack.c.l.b16 %v1527
  %v1545 = vunpack.c.h.b16 %v1527
  %v1546 = vunpack.c.l.b16 %v1528
  %v1547 = vunpack.c.h.b16 %v1528
  %v1548 = vunpack.c.l.b16 %v1529
  %v1549 = vunpack.c.h.b16 %v1529
  %v1550 = vunpack.c.l.b16 %v1530
  %v1551 = vunpack.c.h.b16 %v1530
  %v1552 = vunpack.c.l.b16 %v1531
  %v1553 = vunpack.c.h.b16 %v1531
  %v1554 = vunpack.c.l.b16 %v1532
  %v1555 = vunpack.c.h.b16 %v1532
  %v1556 = vunpack.c.l.b16 %v1533
  %v1557 = vunpack.c.h.b16 %v1533
  %v1558 = vpack.c.b16 %v1544, %v1542
  %v1559 = vpack.c.b16 %v1545, %v1543
  %v1560 = vpack.c.b16 %v1548, %v1546
  %v1561 = vpack.c.b16 %v1549, %v1547
  %v1562 = vpack.c.b16 %v1552, %v1550
  %v1563 = vpack.c.b16 %v1553, %v1551
  %v1564 = vpack.c.b16 %v1556, %v1554
  %v1565 = vpack.c.b16 %v1557, %v1555
  %v1575 = vsel %vm265, %v1525, 0
  %1577 = vmatprep.subr.bf16.mxu0 %v1559
  %1578 = vmatpush1.bf16.msra.mxu0 %v1558
  %1579 = vmatprep.subr.bf16.mxu0 %v1561
  %1580 = vmatpush1.bf16.msra.mxu0 %v1560
  %1581 = vmatprep.subr.bf16.mxu0 %v1563
  %1582 = vmatpush1.bf16.msra.mxu0 %v1562
  %1583 = vmatprep.subr.bf16.mxu0 %v1565
  %1584 = vmatpush1.bf16.msra.mxu0 %v1564
  %1585 = vmatprep.subr.bf16.mxu0 0
  %1586 = vmatpush1.bf16.msra.mxu0 0
  %1587 = vmatprep.subr.bf16.mxu0 0
  %1588 = vmatpush1.bf16.msra.mxu0 0
  %1589 = vmatprep.subr.bf16.mxu0 0
  %1590 = vmatpush1.bf16.msra.mxu0 0
  %1591 = vmatprep.subr.bf16.mxu0 0
  %1592 = vmatpush1.bf16.msra.mxu0 0
  %1593 = vmatprep.subr.bf16.mxu0 0
  %1594 = vmatpush1.bf16.msra.mxu0 0
  %1595 = vmatprep.subr.bf16.mxu0 0
  %1596 = vmatpush1.bf16.msra.mxu0 0
  %1597 = vmatprep.subr.bf16.mxu0 0
  %1598 = vmatpush1.bf16.msra.mxu0 0
  %1599 = vmatprep.subr.bf16.mxu0 0
  %1600 = vmatpush1.bf16.msra.mxu0 0
  %1601 = vmatprep.subr.bf16.mxu0 0
  %1602 = vmatpush1.bf16.msra.mxu0 0
  %1603 = vmatprep.subr.bf16.mxu0 0
  %1604 = vmatpush1.bf16.msra.mxu0 0
  %1605 = vmatprep.subr.bf16.mxu0 0
  %1606 = vmatpush1.bf16.msra.mxu0 0
  %1607 = vmatprep.subr.bf16.mxu0 0
  %1608 = vmatpush1.bf16.msra.mxu0 0
  %1609 = vmatprep.mubr.bf16.mxu0 0
  %1610 = vmatmul.mubr.bf16.gmra.mrb[0].mxu0 %v1575
  %v1611 = vpop.f32.mrb[0].mxu0
  %v1612 = vadd.f32 0.0, %v1611
  %v1613 = vpop.f32.mrb[0].mxu0
  %v1614 = vadd.f32 0.0, %v1613
  %v1615 = vpop.f32.mrb[0].mxu0
  %v1616 = vadd.f32 0.0, %v1615
  %v1617 = vpop.f32.mrb[0].mxu0
  %v1618 = vadd.f32 0.0, %v1617
  %1619 = vdwg.mxu0
  %v1620 = vxor.u32 %v1612, 2147483648
  %v1621 = vxor.u32 %v1616, 2147483648
  %v1622 = vmul.f32 %v1620, 1.442695
  %v1623 = vpow.pop %v1622
  %v1624 = vmul.f32 %v1621, 1.442695
  %v1625 = vpow.pop %v1624
  %v1626 = vadd.f32 %v1623, 1.0
  %v1627 = vadd.f32 %v1625, 1.0
  %v1628 = vrcp.pop %v1626
  %v1629 = vmul.f32 1.0, %v1628
  %v1630 = vrcp.pop %v1627
  %v1631 = vmul.f32 1.0, %v1630
  %v1632 = vmul.f32 %v1612, %v1629
  %v1633 = vmul.f32 %v1616, %v1631
  %v1634 = vmul.f32 %v1632, %v1614
  %v1635 = vmul.f32 %v1633, %v1618
  %v1636 = vpack.c.bf16 %v1635, %v1634
  %v1637 = vld [vmem:[%s13] sm:$0xf]
  %v1638 = vld [vmem:[%s13 + $0x4] sm:$0xf]
  %v1639 = vld [vmem:[%s13 + $0x8] sm:$0xf]
  %v1640 = vld [vmem:[%s13 + $0xc] sm:$0xf]
  %v1641 = vld [vmem:[%s13 + $0x10] sm:$0xf]
  %v1642 = vld [vmem:[%s13 + $0x14] sm:$0xf]
  %v1643 = vld [vmem:[%s13 + $0x18] sm:$0xf]
  %v1644 = vld [vmem:[%s13 + $0x1c] sm:$0xf]
  %v1645 = vld [vmem:[%s13 + $0x20] sm:$0xf]
  %v1646 = vld [vmem:[%s13 + $0x24] sm:$0xf]
  %v1647 = vld [vmem:[%s13 + $0x28] sm:$0xf]
  %v1648 = vld [vmem:[%s13 + $0x2c] sm:$0xf]
  %v1649 = vld [vmem:[%s13 + $0x30] sm:$0xf]
  %v1650 = vld [vmem:[%s13 + $0x34] sm:$0xf]
  %v1651 = vld [vmem:[%s13 + $0x38] sm:$0xf]
  %v1652 = vld [vmem:[%s13 + $0x3c] sm:$0xf]
  %v1669 = vunpack.c.l.b16 %v1637
  %v1670 = vunpack.c.l.b16 %v1638
  %v1671 = vunpack.c.l.b16 %v1639
  %v1672 = vunpack.c.l.b16 %v1640
  %v1673 = vunpack.c.l.b16 %v1641
  %v1674 = vunpack.c.l.b16 %v1642
  %v1675 = vunpack.c.l.b16 %v1643
  %v1676 = vunpack.c.l.b16 %v1644
  %v1677 = vunpack.c.l.b16 %v1645
  %v1678 = vunpack.c.l.b16 %v1646
  %v1679 = vunpack.c.l.b16 %v1647
  %v1680 = vunpack.c.l.b16 %v1648
  %v1681 = vunpack.c.l.b16 %v1649
  %v1682 = vunpack.c.l.b16 %v1650
  %v1683 = vunpack.c.l.b16 %v1651
  %v1684 = vunpack.c.l.b16 %v1652
  %v1685 = vpack.c.b16 %v1670, %v1669
  %v1686 = vpack.c.b16 %v1672, %v1671
  %v1687 = vpack.c.b16 %v1674, %v1673
  %v1688 = vpack.c.b16 %v1676, %v1675
  %v1689 = vpack.c.b16 %v1678, %v1677
  %v1690 = vpack.c.b16 %v1680, %v1679
  %v1691 = vpack.c.b16 %v1682, %v1681
  %v1692 = vpack.c.b16 %v1684, %v1683
  %1701 = vmatprep.subr.bf16.mxu0 0
  %1702 = vmatpush1.bf16.msra.mxu0 %v1685
  %1703 = vmatprep.subr.bf16.mxu0 0
  %1704 = vmatpush1.bf16.msra.mxu0 %v1686
  %1705 = vmatprep.subr.bf16.mxu0 0
  %1706 = vmatpush1.bf16.msra.mxu0 %v1687
  %1707 = vmatprep.subr.bf16.mxu0 0
  %1708 = vmatpush1.bf16.msra.mxu0 %v1688
  %1709 = vmatprep.subr.bf16.mxu0 0
  %1710 = vmatpush1.bf16.msra.mxu0 %v1689
  %1711 = vmatprep.subr.bf16.mxu0 0
  %1712 = vmatpush1.bf16.msra.mxu0 %v1690
  %1713 = vmatprep.subr.bf16.mxu0 0
  %1714 = vmatpush1.bf16.msra.mxu0 %v1691
  %1715 = vmatprep.subr.bf16.mxu0 0
  %1716 = vmatpush1.bf16.msra.mxu0 %v1692
  %1717 = vmatprep.subr.bf16.mxu0 0
  %1718 = vmatpush1.bf16.msra.mxu0 0
  %1719 = vmatprep.subr.bf16.mxu0 0
  %1720 = vmatpush1.bf16.msra.mxu0 0
  %1721 = vmatprep.subr.bf16.mxu0 0
  %1722 = vmatpush1.bf16.msra.mxu0 0
  %1723 = vmatprep.subr.bf16.mxu0 0
  %1724 = vmatpush1.bf16.msra.mxu0 0
  %1725 = vmatprep.subr.bf16.mxu0 0
  %1726 = vmatpush1.bf16.msra.mxu0 0
  %1727 = vmatprep.subr.bf16.mxu0 0
  %1728 = vmatpush1.bf16.msra.mxu0 0
  %1729 = vmatprep.subr.bf16.mxu0 0
  %1730 = vmatpush1.bf16.msra.mxu0 0
  %1731 = vmatprep.subr.bf16.mxu0 0
  %1732 = vmatpush1.bf16.msra.mxu0 0
  %1733 = vmatprep.mubr.bf16.mxu0 0
  %1734 = vmatmul.mubr.bf16.gmra.mrb[0].mxu0 %v1636
  %v1735 = vpop.f32.mrb[0].mxu0
  %v1736 = vadd.f32 0.0, %v1735
  %v1737 = vpop.f32.mrb[0].mxu0
  %v1738 = vpop.f32.mrb[0].mxu0
  %v1739 = vadd.f32 0.0, %v1738
  %v1740 = vpop.f32.mrb[0].mxu0
  %1741 = vdwg.mxu0
  %v1742 = vadd.f32 %v1498, %v1736
  %v1743 = vadd.f32 %v1499, %v1739
  %v1744 = vld [vmem:[%s14] sm:$0xff]
  %v1745 = vld [vmem:[%s14 + $0x8] sm:$0xff]
  %v1746 = vld [vmem:[%s14 + $0x10] sm:$0xff]
  %v1747 = vld [vmem:[%s14 + $0x18] sm:$0xff]
  %v1748 = vld [vmem:[%s14 + $0x20] sm:$0xff]
  %v1749 = vld [vmem:[%s14 + $0x28] sm:$0xff]
  %v1750 = vld [vmem:[%s14 + $0x30] sm:$0xff]
  %v1751 = vld [vmem:[%s14 + $0x38] sm:$0xff]
  %v1753 = vsel %vm265, %v1744, 0
  %v1756 = vsel %vm265, %v1745, 0
  %v1759 = vsel %vm265, %v1746, 0
  %v1762 = vsel %vm265, %v1747, 0
  %v1765 = vsel %vm265, %v1748, 0
  %v1768 = vsel %vm265, %v1749, 0
  %v1771 = vsel %vm265, %v1750, 0
  %v1774 = vsel %vm265, %v1751, 0
  %v1777 = vsel %vm265, %v1742, 0
  %1779 = vmatprep.subr.mxu0 0.0
  %1780 = vmatpush1.xpose.msra.mxu0 %v1777
  %1781 = vmatprep.subr.mxu0 0.0
  %1782 = vmatpush1.xpose.msra.mxu0 0.0
  %1783 = vmatprep.subr.mxu0 0.0
  %1784 = vmatpush1.xpose.msra.mxu0 0.0
  %1785 = vmatprep.subr.mxu0 0.0
  %1786 = vmatpush1.xpose.msra.mxu0 0.0
  %1787 = vmatprep.subr.mxu0 0.0
  %1788 = vmatpush1.xpose.msra.mxu0 0.0
  %1789 = vmatprep.subr.mxu0 0.0
  %1790 = vmatpush1.xpose.msra.mxu0 0.0
  %1791 = vmatprep.subr.mxu0 0.0
  %1792 = vmatpush1.xpose.msra.mxu0 0.0
  %1793 = vmatprep.subr.mxu0 0.0
  %1794 = vmatpush1.xpose.msra.mxu0 0.0
  %1795 = vmatprep.subr.mxu0 0.0
  %1796 = vmatpush1.xpose.msra.mxu0 0.0
  %1797 = vmatprep.subr.mxu0 0.0
  %1798 = vmatpush1.xpose.msra.mxu0 0.0
  %1799 = vmatprep.subr.mxu0 0.0
  %1800 = vmatpush1.xpose.msra.mxu0 0.0
  %1801 = vmatprep.subr.mxu0 0.0
  %1802 = vmatpush1.xpose.msra.mxu0 0.0
  %1803 = vmatprep.subr.mxu0 0.0
  %1804 = vmatpush1.xpose.msra.mxu0 0.0
  %1805 = vmatprep.subr.mxu0 0.0
  %1806 = vmatpush1.xpose.msra.mxu0 0.0
  %1807 = vmatprep.subr.mxu0 0.0
  %1808 = vmatpush1.xpose.msra.mxu0 0.0
  %1809 = vmatprep.subr.mxu0 0.0
  %1810 = vmatpush1.xpose.msra.mxu0 0.0
  %1811 = vmatprep.subr.mxu0 0.0
  %1812 = vmatpush1.xpose.msra.mxu0 0.0
  %1813 = vmatprep.subr.mxu0 0.0
  %1814 = vmatpush1.xpose.msra.mxu0 0.0
  %1815 = vmatprep.subr.mxu0 0.0
  %1816 = vmatpush1.xpose.msra.mxu0 0.0
  %1817 = vmatprep.subr.mxu0 0.0
  %1818 = vmatpush1.xpose.msra.mxu0 0.0
  %1819 = vmatprep.subr.mxu0 0.0
  %1820 = vmatpush1.xpose.msra.mxu0 0.0
  %1821 = vmatprep.subr.mxu0 0.0
  %1822 = vmatpush1.xpose.msra.mxu0 0.0
  %1823 = vmatprep.subr.mxu0 0.0
  %1824 = vmatpush1.xpose.msra.mxu0 0.0
  %1825 = vmatprep.subr.mxu0 0.0
  %1826 = vmatpush1.xpose.msra.mxu0 0.0
  %1827 = vmatprep.subr.mxu0 0.0
  %1828 = vmatpush1.xpose.msra.mxu0 0.0
  %1829 = vmatprep.subr.mxu0 0.0
  %1830 = vmatpush1.xpose.msra.mxu0 0.0
  %1831 = vmatprep.subr.mxu0 0.0
  %1832 = vmatpush1.xpose.msra.mxu0 0.0
  %1833 = vmatprep.subr.mxu0 0.0
  %1834 = vmatpush1.xpose.msra.mxu0 0.0
  %1835 = vmatprep.subr.mxu0 0.0
  %1836 = vmatpush1.xpose.msra.mxu0 0.0
  %1837 = vmatprep.subr.mxu0 0.0
  %1838 = vmatpush1.xpose.msra.mxu0 0.0
  %1839 = vmatprep.subr.mxu0 0.0
  %1840 = vmatpush1.xpose.msra.mxu0 0.0
  %1841 = vmatprep.subr.mxu0 0.0
  %1842 = vmatpush1.xpose.msra.mxu0 0.0
  %1843 = vmatprep.mubr.f32.mxu0 0.0
  %1844 = vmatmul.mubr.f32.gmra.mrb[0].mxu0 %v1753
  %v1845 = vpop.f32.mrb[0].mxu0
  %v1846 = vadd.f32 0.0, %v1845
  %v1847 = vpop.f32.mrb[0].mxu0
  %1848 = vmatprep.mubr.f32.mxu0 0.0
  %1849 = vmatmul.mubr.f32.gmra.mrb[0].mxu0 %v1756
  %v1850 = vpop.f32.mrb[0].mxu0
  %v1851 = vadd.f32 0.0, %v1850
  %v1852 = vpop.f32.mrb[0].mxu0
  %1853 = vmatprep.mubr.f32.mxu0 0.0
  %1854 = vmatmul.mubr.f32.gmra.mrb[0].mxu0 %v1759
  %v1855 = vpop.f32.mrb[0].mxu0
  %v1856 = vadd.f32 0.0, %v1855
  %v1857 = vpop.f32.mrb[0].mxu0
  %1858 = vmatprep.mubr.f32.mxu0 0.0
  %1859 = vmatmul.mubr.f32.gmra.mrb[0].mxu0 %v1762
  %v1860 = vpop.f32.mrb[0].mxu0
  %v1861 = vadd.f32 0.0, %v1860
  %v1862 = vpop.f32.mrb[0].mxu0
  %1863 = vmatprep.mubr.f32.mxu0 0.0
  %1864 = vmatmul.mubr.f32.gmra.mrb[0].mxu0 %v1765
  %v1865 = vpop.f32.mrb[0].mxu0
  %v1866 = vadd.f32 0.0, %v1865
  %v1867 = vpop.f32.mrb[0].mxu0
  %1868 = vmatprep.mubr.f32.mxu0 0.0
  %1869 = vmatmul.mubr.f32.gmra.mrb[0].mxu0 %v1768
  %v1870 = vpop.f32.mrb[0].mxu0
  %v1871 = vadd.f32 0.0, %v1870
  %v1872 = vpop.f32.mrb[0].mxu0
  %1873 = vmatprep.mubr.f32.mxu0 0.0
  %1874 = vmatmul.mubr.f32.gmra.mrb[0].mxu0 %v1771
  %v1875 = vpop.f32.mrb[0].mxu0
  %v1876 = vadd.f32 0.0, %v1875
  %v1877 = vpop.f32.mrb[0].mxu0
  %1878 = vmatprep.mubr.f32.mxu0 0.0
  %1879 = vmatmul.mubr.f32.gmra.mrb[0].mxu0 %v1774
  %v1880 = vpop.f32.mrb[0].mxu0
  %v1881 = vadd.f32 0.0, %v1880
  %v1882 = vpop.f32.mrb[0].mxu0
  %1883 = vdwg.mxu0
  %1884 = vst.msk [vmem:[%s15] sm:$0xff] %vm62, %v1846
  %1885 = vst.msk [vmem:[%s15 + $0x8] sm:$0xff] %vm62, %v1851
  %1886 = vst.msk [vmem:[%s15 + $0x10] sm:$0xff] %vm62, %v1856
  %1887 = vst.msk [vmem:[%s15 + $0x18] sm:$0xff] %vm62, %v1861
  %1888 = vst.msk [vmem:[%s15 + $0x20] sm:$0xff] %vm62, %v1866
  %1889 = vst.msk [vmem:[%s15 + $0x28] sm:$0xff] %vm62, %v1871
  %1890 = vst.msk [vmem:[%s15 + $0x30] sm:$0xff] %vm62, %v1876
  %1891 = vst.msk [vmem:[%s15 + $0x38] sm:$0xff] %vm62, %v1881
  %v1892 = vld [vmem:[%s14] sm:$0xff]
  %v1893 = vld [vmem:[%s14 + $0x8] sm:$0xff]
  %v1894 = vld [vmem:[%s14 + $0x10] sm:$0xff]
  %v1895 = vld [vmem:[%s14 + $0x18] sm:$0xff]
  %v1896 = vld [vmem:[%s14 + $0x20] sm:$0xff]
  %v1897 = vld [vmem:[%s14 + $0x28] sm:$0xff]
  %v1898 = vld [vmem:[%s14 + $0x30] sm:$0xff]
  %v1899 = vld [vmem:[%s14 + $0x38] sm:$0xff]
  %v1901 = vsel %vm265, %v1892, 0
  %v1904 = vsel %vm265, %v1893, 0
  %v1907 = vsel %vm265, %v1894, 0
  %v1910 = vsel %vm265, %v1895, 0
  %v1913 = vsel %vm265, %v1896, 0
  %v1916 = vsel %vm265, %v1897, 0
  %v1919 = vsel %vm265, %v1898, 0
  %v1922 = vsel %vm265, %v1899, 0
  %v1925 = vsel %vm265, %v1743, 0
  %1927 = vmatprep.subr.mxu0 0.0
  %1928 = vmatpush1.xpose.msra.mxu0 %v1925
  %1929 = vmatprep.subr.mxu0 0.0
  %1930 = vmatpush1.xpose.msra.mxu0 0.0
  %1931 = vmatprep.subr.mxu0 0.0
  %1932 = vmatpush1.xpose.msra.mxu0 0.0
  %1933 = vmatprep.subr.mxu0 0.0
  %1934 = vmatpush1.xpose.msra.mxu0 0.0
  %1935 = vmatprep.subr.mxu0 0.0
  %1936 = vmatpush1.xpose.msra.mxu0 0.0
  %1937 = vmatprep.subr.mxu0 0.0
  %1938 = vmatpush1.xpose.msra.mxu0 0.0
  %1939 = vmatprep.subr.mxu0 0.0
  %1940 = vmatpush1.xpose.msra.mxu0 0.0
  %1941 = vmatprep.subr.mxu0 0.0
  %1942 = vmatpush1.xpose.msra.mxu0 0.0
  %1943 = vmatprep.subr.mxu0 0.0
  %1944 = vmatpush1.xpose.msra.mxu0 0.0
  %1945 = vmatprep.subr.mxu0 0.0
  %1946 = vmatpush1.xpose.msra.mxu0 0.0
  %1947 = vmatprep.subr.mxu0 0.0
  %1948 = vmatpush1.xpose.msra.mxu0 0.0
  %1949 = vmatprep.subr.mxu0 0.0
  %1950 = vmatpush1.xpose.msra.mxu0 0.0
  %1951 = vmatprep.subr.mxu0 0.0
  %1952 = vmatpush1.xpose.msra.mxu0 0.0
  %1953 = vmatprep.subr.mxu0 0.0
  %1954 = vmatpush1.xpose.msra.mxu0 0.0
  %1955 = vmatprep.subr.mxu0 0.0
  %1956 = vmatpush1.xpose.msra.mxu0 0.0
  %1957 = vmatprep.subr.mxu0 0.0
  %1958 = vmatpush1.xpose.msra.mxu0 0.0
  %1959 = vmatprep.subr.mxu0 0.0
  %1960 = vmatpush1.xpose.msra.mxu0 0.0
  %1961 = vmatprep.subr.mxu0 0.0
  %1962 = vmatpush1.xpose.msra.mxu0 0.0
  %1963 = vmatprep.subr.mxu0 0.0
  %1964 = vmatpush1.xpose.msra.mxu0 0.0
  %1965 = vmatprep.subr.mxu0 0.0
  %1966 = vmatpush1.xpose.msra.mxu0 0.0
  %1967 = vmatprep.subr.mxu0 0.0
  %1968 = vmatpush1.xpose.msra.mxu0 0.0
  %1969 = vmatprep.subr.mxu0 0.0
  %1970 = vmatpush1.xpose.msra.mxu0 0.0
  %1971 = vmatprep.subr.mxu0 0.0
  %1972 = vmatpush1.xpose.msra.mxu0 0.0
  %1973 = vmatprep.subr.mxu0 0.0
  %1974 = vmatpush1.xpose.msra.mxu0 0.0
  %1975 = vmatprep.subr.mxu0 0.0
  %1976 = vmatpush1.xpose.msra.mxu0 0.0
  %1977 = vmatprep.subr.mxu0 0.0
  %1978 = vmatpush1.xpose.msra.mxu0 0.0
  %1979 = vmatprep.subr.mxu0 0.0
  %1980 = vmatpush1.xpose.msra.mxu0 0.0
  %1981 = vmatprep.subr.mxu0 0.0
  %1982 = vmatpush1.xpose.msra.mxu0 0.0
  %1983 = vmatprep.subr.mxu0 0.0
  %1984 = vmatpush1.xpose.msra.mxu0 0.0
  %1985 = vmatprep.subr.mxu0 0.0
  %1986 = vmatpush1.xpose.msra.mxu0 0.0
  %1987 = vmatprep.subr.mxu0 0.0
  %1988 = vmatpush1.xpose.msra.mxu0 0.0
  %1989 = vmatprep.subr.mxu0 0.0
  %1990 = vmatpush1.xpose.msra.mxu0 0.0
  %1991 = vmatprep.mubr.f32.mxu0 0.0
  %1992 = vmatmul.mubr.f32.gmra.mrb[0].mxu0 %v1901
  %v1993 = vpop.f32.mrb[0].mxu0
  %v1994 = vadd.f32 0.0, %v1993
  %v1995 = vpop.f32.mrb[0].mxu0
  %1996 = vmatprep.mubr.f32.mxu0 0.0
  %1997 = vmatmul.mubr.f32.gmra.mrb[0].mxu0 %v1904
  %v1998 = vpop.f32.mrb[0].mxu0
  %v1999 = vadd.f32 0.0, %v1998
  %v2000 = vpop.f32.mrb[0].mxu0
  %2001 = vmatprep.mubr.f32.mxu0 0.0
  %2002 = vmatmul.mubr.f32.gmra.mrb[0].mxu0 %v1907
  %v2003 = vpop.f32.mrb[0].mxu0
  %v2004 = vadd.f32 0.0, %v2003
  %v2005 = vpop.f32.mrb[0].mxu0
  %2006 = vmatprep.mubr.f32.mxu0 0.0
  %2007 = vmatmul.mubr.f32.gmra.mrb[0].mxu0 %v1910
  %v2008 = vpop.f32.mrb[0].mxu0
  %v2009 = vadd.f32 0.0, %v2008
  %v2010 = vpop.f32.mrb[0].mxu0
  %2011 = vmatprep.mubr.f32.mxu0 0.0
  %2012 = vmatmul.mubr.f32.gmra.mrb[0].mxu0 %v1913
  %v2013 = vpop.f32.mrb[0].mxu0
  %v2014 = vadd.f32 0.0, %v2013
  %v2015 = vpop.f32.mrb[0].mxu0
  %2016 = vmatprep.mubr.f32.mxu0 0.0
  %2017 = vmatmul.mubr.f32.gmra.mrb[0].mxu0 %v1916
  %v2018 = vpop.f32.mrb[0].mxu0
  %v2019 = vadd.f32 0.0, %v2018
  %v2020 = vpop.f32.mrb[0].mxu0
  %2021 = vmatprep.mubr.f32.mxu0 0.0
  %2022 = vmatmul.mubr.f32.gmra.mrb[0].mxu0 %v1919
  %v2023 = vpop.f32.mrb[0].mxu0
  %v2024 = vadd.f32 0.0, %v2023
  %v2025 = vpop.f32.mrb[0].mxu0
  %2026 = vmatprep.mubr.f32.mxu0 0.0
  %2027 = vmatmul.mubr.f32.gmra.mrb[0].mxu0 %v1922
  %v2028 = vpop.f32.mrb[0].mxu0
  %v2029 = vadd.f32 0.0, %v2028
  %v2030 = vpop.f32.mrb[0].mxu0
  %2031 = vdwg.mxu0
  %s2032 = scalar_lea.vmem %s15, 64
  %2033 = vst.msk [vmem:[%s2032] sm:$0xff] %vm62, %v1994
  %2034 = vst.msk [vmem:[%s2032 + $0x8] sm:$0xff] %vm62, %v1999
  %2035 = vst.msk [vmem:[%s2032 + $0x10] sm:$0xff] %vm62, %v2004
  %2036 = vst.msk [vmem:[%s2032 + $0x18] sm:$0xff] %vm62, %v2009
  %2037 = vst.msk [vmem:[%s2032 + $0x20] sm:$0xff] %vm62, %v2014
  %2038 = vst.msk [vmem:[%s2032 + $0x28] sm:$0xff] %vm62, %v2019
  %2039 = vst.msk [vmem:[%s2032 + $0x30] sm:$0xff] %vm62, %v2024
  %2040 = vst.msk [vmem:[%s2032 + $0x38] sm:$0xff] %vm62, %v2029
  // Predicated region
  $region62: #{qwen2_decoder_layer.1} parent=0 // pred_check
    _
  $region63: #{qwen2_decoder_layer.1} parent=0 // pred_check_branch
    %2042 = sbr.rel (0) target = $region65
  $region64: #{qwen2_decoder_layer.1} parent=0 // pred_region
    _
  $region65: #{qwen2_decoder_layer.1} parent=0 // pred_fallthru
    _
  // Predicated region
  $region66: #{qwen2_decoder_layer.1} parent=0 // pred_check
    _
  $region67: #{qwen2_decoder_layer.1} parent=0 // pred_check_branch
    %2044 = sbr.rel (0) target = $region69
  $region68: #{qwen2_decoder_layer.1} parent=0 // pred_region
    _
  $region69: #{qwen2_decoder_layer.1} parent=0 // pred_fallthru
    _
  // Predicated region
  $region70: #{qwen2_decoder_layer.1} parent=0 // pred_check
    _
  $region71: #{qwen2_decoder_layer.1} parent=0 // pred_check_branch
    %2046 = sbr.rel (0) target = $region73
  $region72: #{qwen2_decoder_layer.1} parent=0 // pred_region
    _
  $region73: #{qwen2_decoder_layer.1} parent=0 // pred_fallthru
    _
  // Predicated region
  $region74: #{qwen2_decoder_layer.1} parent=0 // pred_check
    _
  $region75: #{qwen2_decoder_layer.1} parent=0 // pred_check_branch
    %2048 = sbr.rel (0) target = $region77
  $region76: #{qwen2_decoder_layer.1} parent=0 // pred_region
    _
  $region77: #{qwen2_decoder_layer.1} parent=0 // pred_fallthru
    _

</llo_original>
